<compile_context>
chip_gen: v7x
topology: tpu7x:2x2x1
jax: 0.10.0
libtpu: 0.0.40
codegen_flags: <defaults>
</compile_context>

<pallas_src>
import functools

import jax
import jax.numpy as jnp
from jax import lax
from jax.experimental import pallas as pl
from jax.experimental.pallas import tpu as pltpu

# --------------------------- configuration ------------------------------
BATCH = 2
SEQ = 16                      # multiple of 8 -> clean f32 sublane tiles
DIM = 32
HEADS = 4
DIM_HEAD = 8
INNER = HEADS * DIM_HEAD      # 32 -> project_out is True (heads != 1)
SCALE = DIM_HEAD ** (-0.5)
LN_EPS = 1e-5
DTYPE = jnp.float32


# ------------------------------ kernel ----------------------------------
def _attention_kernel(x_ref, g_ref, b_ref, wqkv_ref, wout_ref, bout_ref, o_ref,
                      *, batch, seq, heads, dim_head):
    """Fused LayerNorm + QKV + multi-head attention + out-proj + residual.

    The whole (B*N, D) problem is processed in a single grid step; every
    intermediate stays in VMEM / vregs.
    """
    x = x_ref[...].astype(jnp.float32)                        # (B*N, D)

    # LayerNorm (self.norm ~ nn.LayerNorm(dim)) -- independent reductions so
    # both XLU reduces can issue back-to-back.
    mu = jnp.mean(x, axis=-1, keepdims=True)
    ms = jnp.mean(x * x, axis=-1, keepdims=True)
    var = ms - mu * mu
    xn = (x - mu) * lax.rsqrt(var + LN_EPS)
    xn = xn * g_ref[...] + b_ref[...]

    # QKV projection (bias=False), one (32,32)@(32,96) MXU op for all batches.
    qkv = jnp.dot(xn, wqkv_ref[...],
                  preferred_element_type=jnp.float32)          # (B*N, 3*inner)

    inner = heads * dim_head

    # Per-(batch, head) attention; head outputs are concatenated (layout-only)
    # and projected with ONE matmul after the loop -> no serial add chain.
    o_rows = []
    for bi in range(batch):                                    # static unroll
        r0 = bi * seq
        o_heads = []
        for h in range(heads):                                 # static unroll
            q = qkv[r0:r0 + seq, h * dim_head:(h + 1) * dim_head]
            k = qkv[r0:r0 + seq,
                    inner + h * dim_head: inner + (h + 1) * dim_head]
            v = qkv[r0:r0 + seq,
                    2 * inner + h * dim_head: 2 * inner + (h + 1) * dim_head]
            # q @ k^T without an explicit transpose: contract last dims.
            s = lax.dot_general(q, k, (((1,), (1,)), ((), ())),
                                preferred_element_type=jnp.float32)   # (N, N)
            s = s * SCALE                       # one VPU mul, hidden under MXU
            s = s - jnp.max(s, axis=-1, keepdims=True)
            p = jnp.exp(s)
            p = p * pl.reciprocal(jnp.sum(p, axis=-1, keepdims=True),
                                  approx=True)
            o_heads.append(jnp.dot(p, v,
                                   preferred_element_type=jnp.float32))  # (N, Dh)
        o_rows.append(jnp.concatenate(o_heads, axis=-1))       # (N, inner)
    o_cat = jnp.concatenate(o_rows, axis=0)                    # (B*N, inner)

    # merge-heads + to_out Linear + bias + residual, one MXU op.
    out = x + bout_ref[...] + jnp.dot(o_cat, wout_ref[...],
                                      preferred_element_type=jnp.float32)
    o_ref[...] = out.astype(o_ref.dtype)


# ------------------------------ wrapper ---------------------------------
def attention_forward(params, x):
    b, n, d = x.shape
    inner = HEADS * DIM_HEAD
    bn = b * n

    x2 = x.reshape(bn, d)          # contiguous -> free metadata reshape

    full = lambda i: (0, 0)
    out2 = pl.pallas_call(
        functools.partial(_attention_kernel, batch=b, seq=n,
                          heads=HEADS, dim_head=DIM_HEAD),
        # Single grid step: the whole problem fits in ~30 KB of VMEM.
        # (v7x-only alternative: grid=(b,), dimension_semantics=("parallel",)
        #  so each TensorCore takes one batch element -- benchmark; at us
        #  scale the cross-core launch/sync usually loses.)
        grid=(1,),
        out_shape=jax.ShapeDtypeStruct((bn, d), x.dtype),
        in_specs=[
            pl.BlockSpec((bn, d), full),            # x (flattened batch)
            pl.BlockSpec((1, d), full),             # ln gamma
            pl.BlockSpec((1, d), full),             # ln beta
            pl.BlockSpec((d, 3 * inner), full),     # W_qkv (unscaled)
            pl.BlockSpec((inner, d), full),         # W_out
            pl.BlockSpec((1, d), full),             # b_out
        ],
        out_specs=pl.BlockSpec((bn, d), full),
        compiler_params=pltpu.CompilerParams(
            dimension_semantics=("arbitrary",)),
        cost_estimate=pl.CostEstimate(
            flops=340_000,            # qkv + 8x(s, p@v) + out-proj (+ LN/softmax)
            transcendentals=2_208,    # exp(2048) + rsqrt(32) + reciprocal(128)
            bytes_accessed=25_000),   # ~21 KB in + 4 KB out
    )(x2, params["ln_g"], params["ln_b"], params["wqkv"], params["wout"],
      params["bout"])
    return out2.reshape(b, n, d)


# --------------------------- pure-JAX reference --------------------------
def attention_ref(params, x):
    b, n, d = x.shape
    mu = jnp.mean(x, -1, keepdims=True)
    var = jnp.mean((x - mu) ** 2, -1, keepdims=True)
    xn = (x - mu) / jnp.sqrt(var + LN_EPS) * params["ln_g"] + params["ln_b"]
    qkv = xn @ params["wqkv"]
    q, k, v = jnp.split(qkv, 3, axis=-1)
    split = lambda t: t.reshape(b, n, HEADS, DIM_HEAD).transpose(0, 2, 1, 3)
    q, k, v = map(split, (q, k, v))
    s = jnp.einsum("bhnd,bhmd->bhnm", q, k) * SCALE
    p = jax.nn.softmax(s, axis=-1)
    o = jnp.einsum("bhnm,bhmd->bhnd", p, v)
    o = o.transpose(0, 2, 1, 3).reshape(b, n, HEADS * DIM_HEAD)
    return o @ params["wout"] + params["bout"] + x


# -------------------------------- main -----------------------------------
if __name__ == "__main__":
    key = jax.random.PRNGKey(0)
    k_x, k_qkv, k_out, k_g, k_b = jax.random.split(key, 5)

    # Parameters are stored in the exact shapes the kernel consumes (no
    # per-call reshapes / rewrites inside the jitted forward).
    params = {
        "ln_g": (1.0 + 0.1 * jax.random.normal(k_g, (1, DIM))).astype(DTYPE),
        "ln_b": (0.1 * jax.random.normal(k_b, (1, DIM))).astype(DTYPE),
        "wqkv": (0.2 * jax.random.normal(k_qkv, (DIM, 3 * INNER))).astype(DTYPE),
        "wout": (0.2 * jax.random.normal(k_out, (INNER, DIM))).astype(DTYPE),
        "bout": jnp.zeros((1, DIM), DTYPE),
    }
    x = jax.random.normal(k_x, (BATCH, SEQ, DIM), dtype=DTYPE)

    out = jax.jit(attention_forward)(params, x)
    out = jax.block_until_ready(out)

    assert out.shape == (BATCH, SEQ, DIM), out.shape
    assert bool(jnp.all(jnp.isfinite(out)))

    ref = attention_ref(params, x)
    err = float(jnp.max(jnp.abs(out - ref)))
    assert err < 1e-2, f"max abs error vs reference: {err}"

    print("KERNEL_OK")
</pallas_src>

<mosaic_0001>
module attributes {stable_mosaic.version = 11 : i64} {
  func.func @_attention_kernel(%arg0: i32, %arg1: memref<32x32xf32, #tpu.memory_space<vmem>>, %arg2: memref<1x32xf32, #tpu.memory_space<vmem>>, %arg3: memref<1x32xf32, #tpu.memory_space<vmem>>, %arg4: memref<32x96xf32, #tpu.memory_space<vmem>>, %arg5: memref<32x32xf32, #tpu.memory_space<vmem>>, %arg6: memref<1x32xf32, #tpu.memory_space<vmem>>, %arg7: memref<32x32xf32, #tpu.memory_space<vmem>>) attributes {dimension_semantics = [#tpu.dimension_semantics<arbitrary>], iteration_bounds = array<i64: 1>, scalar_prefetch = 0 : i64, scratch_operands = 0 : i64, tpu.core_type = #tpu.core_type<tc>, window_params = [{pipeline_mode = #tpu.pipeline_mode<synchronous>, transform_indices = @transform_0, window_bounds = array<i64: 32, 32>}, {pipeline_mode = #tpu.pipeline_mode<synchronous>, transform_indices = @transform_1, window_bounds = array<i64: 1, 32>}, {pipeline_mode = #tpu.pipeline_mode<synchronous>, transform_indices = @transform_2, window_bounds = array<i64: 1, 32>}, {pipeline_mode = #tpu.pipeline_mode<synchronous>, transform_indices = @transform_3, window_bounds = array<i64: 32, 96>}, {pipeline_mode = #tpu.pipeline_mode<synchronous>, transform_indices = @transform_4, window_bounds = array<i64: 32, 32>}, {pipeline_mode = #tpu.pipeline_mode<synchronous>, transform_indices = @transform_5, window_bounds = array<i64: 1, 32>}, {pipeline_mode = #tpu.pipeline_mode<synchronous>, transform_indices = @transform_6, window_bounds = array<i64: 32, 32>}]} {
    %c0 = arith.constant 0 : index
    %c0_0 = arith.constant 0 : index
    %0 = vector.load %arg1[%c0, %c0_0] : memref<32x32xf32, #tpu.memory_space<vmem>>, vector<32x32xf32>
    %cst = arith.constant dense<0.000000e+00> : vector<32xf32>
    %1 = vector.multi_reduction <add>, %0, %cst [1] : vector<32x32xf32> to vector<32xf32>
    %2 = vector.shape_cast %1 : vector<32xf32> to vector<32x1xf32>
    %cst_1 = arith.constant 3.200000e+01 : f32
    %3 = vector.broadcast %cst_1 : f32 to vector<32x1xf32>
    %4 = arith.divf %2, %3 : vector<32x1xf32>
    %5 = arith.mulf %0, %0 : vector<32x32xf32>
    %cst_2 = arith.constant dense<0.000000e+00> : vector<32xf32>
    %6 = vector.multi_reduction <add>, %5, %cst_2 [1] : vector<32x32xf32> to vector<32xf32>
    %7 = vector.shape_cast %6 : vector<32xf32> to vector<32x1xf32>
    %cst_3 = arith.constant 3.200000e+01 : f32
    %8 = vector.broadcast %cst_3 : f32 to vector<32x1xf32>
    %9 = arith.divf %7, %8 : vector<32x1xf32>
    %10 = arith.mulf %4, %4 : vector<32x1xf32>
    %11 = arith.subf %9, %10 : vector<32x1xf32>
    %12 = vector.broadcast %4 : vector<32x1xf32> to vector<32x32xf32>
    %13 = arith.subf %0, %12 : vector<32x32xf32>
    %cst_4 = arith.constant 9.99999974E-6 : f32
    %14 = vector.broadcast %cst_4 : f32 to vector<32x1xf32>
    %15 = arith.addf %11, %14 : vector<32x1xf32>
    %16 = math.rsqrt %15 : vector<32x1xf32>
    %17 = vector.broadcast %16 : vector<32x1xf32> to vector<32x32xf32>
    %18 = arith.mulf %13, %17 : vector<32x32xf32>
    %c0_5 = arith.constant 0 : index
    %c0_6 = arith.constant 0 : index
    %19 = vector.load %arg2[%c0_5, %c0_6] : memref<1x32xf32, #tpu.memory_space<vmem>>, vector<1x32xf32>
    %20 = vector.broadcast %19 : vector<1x32xf32> to vector<32x32xf32>
    %21 = arith.mulf %18, %20 : vector<32x32xf32>
    %c0_7 = arith.constant 0 : index
    %c0_8 = arith.constant 0 : index
    %22 = vector.load %arg3[%c0_7, %c0_8] : memref<1x32xf32, #tpu.memory_space<vmem>>, vector<1x32xf32>
    %23 = vector.broadcast %22 : vector<1x32xf32> to vector<32x32xf32>
    %24 = arith.addf %21, %23 : vector<32x32xf32>
    %c0_9 = arith.constant 0 : index
    %c0_10 = arith.constant 0 : index
    %25 = vector.load %arg4[%c0_9, %c0_10] : memref<32x96xf32, #tpu.memory_space<vmem>>, vector<32x96xf32>
    %cst_11 = arith.constant dense<0.000000e+00> : vector<32x96xf32>
    %26 = tpu.matmul %24, %25, %cst_11 {dimension_numbers = #tpu.dot_dimension_numbers<[1], [0], [0], [1], [0, 0, 1, 1], [], []>} : vector<32x32xf32>, vector<32x96xf32>, vector<32x96xf32> -> vector<32x96xf32>
    %27 = vector.extract_strided_slice %26 {offsets = [0, 0], sizes = [16, 8], strides = [1, 1]} : vector<32x96xf32> to vector<16x8xf32>
    %28 = vector.extract_strided_slice %26 {offsets = [0, 32], sizes = [16, 8], strides = [1, 1]} : vector<32x96xf32> to vector<16x8xf32>
    %29 = vector.extract_strided_slice %26 {offsets = [0, 64], sizes = [16, 8], strides = [1, 1]} : vector<32x96xf32> to vector<16x8xf32>
    %cst_12 = arith.constant dense<0.000000e+00> : vector<16x16xf32>
    %30 = tpu.matmul %27, %28, %cst_12 {dimension_numbers = #tpu.dot_dimension_numbers<[1], [1], [0], [0], [0, 0, 1, 0], [], []>} : vector<16x8xf32>, vector<16x8xf32>, vector<16x16xf32> -> vector<16x16xf32>
    %cst_13 = arith.constant 0.353553385 : f32
    %31 = vector.broadcast %cst_13 : f32 to vector<16x16xf32>
    %32 = arith.mulf %30, %31 : vector<16x16xf32>
    %cst_14 = arith.constant dense<0xFF800000> : vector<16xf32>
    %33 = vector.multi_reduction <maximumf>, %32, %cst_14 [1] : vector<16x16xf32> to vector<16xf32>
    %34 = vector.shape_cast %33 : vector<16xf32> to vector<16x1xf32>
    %35 = vector.broadcast %34 : vector<16x1xf32> to vector<16x16xf32>
    %36 = arith.subf %32, %35 : vector<16x16xf32>
    %37 = math.exp %36 : vector<16x16xf32>
    %cst_15 = arith.constant dense<0.000000e+00> : vector<16xf32>
    %38 = vector.multi_reduction <add>, %37, %cst_15 [1] : vector<16x16xf32> to vector<16xf32>
    %39 = vector.shape_cast %38 : vector<16xf32> to vector<16x1xf32>
    %40 = tpu.reciprocal %39 {approx = true} : vector<16x1xf32> -> vector<16x1xf32>
    %41 = vector.broadcast %40 : vector<16x1xf32> to vector<16x16xf32>
    %42 = arith.mulf %37, %41 : vector<16x16xf32>
    %cst_16 = arith.constant dense<0.000000e+00> : vector<16x8xf32>
    %43 = tpu.matmul %42, %29, %cst_16 {dimension_numbers = #tpu.dot_dimension_numbers<[1], [0], [0], [1], [0, 0, 1, 1], [], []>} : vector<16x16xf32>, vector<16x8xf32>, vector<16x8xf32> -> vector<16x8xf32>
    %44 = vector.extract_strided_slice %26 {offsets = [0, 8], sizes = [16, 8], strides = [1, 1]} : vector<32x96xf32> to vector<16x8xf32>
    %45 = vector.extract_strided_slice %26 {offsets = [0, 40], sizes = [16, 8], strides = [1, 1]} : vector<32x96xf32> to vector<16x8xf32>
    %46 = vector.extract_strided_slice %26 {offsets = [0, 72], sizes = [16, 8], strides = [1, 1]} : vector<32x96xf32> to vector<16x8xf32>
    %cst_17 = arith.constant dense<0.000000e+00> : vector<16x16xf32>
    %47 = tpu.matmul %44, %45, %cst_17 {dimension_numbers = #tpu.dot_dimension_numbers<[1], [1], [0], [0], [0, 0, 1, 0], [], []>} : vector<16x8xf32>, vector<16x8xf32>, vector<16x16xf32> -> vector<16x16xf32>
    %cst_18 = arith.constant 0.353553385 : f32
    %48 = vector.broadcast %cst_18 : f32 to vector<16x16xf32>
    %49 = arith.mulf %47, %48 : vector<16x16xf32>
    %cst_19 = arith.constant dense<0xFF800000> : vector<16xf32>
    %50 = vector.multi_reduction <maximumf>, %49, %cst_19 [1] : vector<16x16xf32> to vector<16xf32>
    %51 = vector.shape_cast %50 : vector<16xf32> to vector<16x1xf32>
    %52 = vector.broadcast %51 : vector<16x1xf32> to vector<16x16xf32>
    %53 = arith.subf %49, %52 : vector<16x16xf32>
    %54 = math.exp %53 : vector<16x16xf32>
    %cst_20 = arith.constant dense<0.000000e+00> : vector<16xf32>
    %55 = vector.multi_reduction <add>, %54, %cst_20 [1] : vector<16x16xf32> to vector<16xf32>
    %56 = vector.shape_cast %55 : vector<16xf32> to vector<16x1xf32>
    %57 = tpu.reciprocal %56 {approx = true} : vector<16x1xf32> -> vector<16x1xf32>
    %58 = vector.broadcast %57 : vector<16x1xf32> to vector<16x16xf32>
    %59 = arith.mulf %54, %58 : vector<16x16xf32>
    %cst_21 = arith.constant dense<0.000000e+00> : vector<16x8xf32>
    %60 = tpu.matmul %59, %46, %cst_21 {dimension_numbers = #tpu.dot_dimension_numbers<[1], [0], [0], [1], [0, 0, 1, 1], [], []>} : vector<16x16xf32>, vector<16x8xf32>, vector<16x8xf32> -> vector<16x8xf32>
    %61 = vector.extract_strided_slice %26 {offsets = [0, 16], sizes = [16, 8], strides = [1, 1]} : vector<32x96xf32> to vector<16x8xf32>
    %62 = vector.extract_strided_slice %26 {offsets = [0, 48], sizes = [16, 8], strides = [1, 1]} : vector<32x96xf32> to vector<16x8xf32>
    %63 = vector.extract_strided_slice %26 {offsets = [0, 80], sizes = [16, 8], strides = [1, 1]} : vector<32x96xf32> to vector<16x8xf32>
    %cst_22 = arith.constant dense<0.000000e+00> : vector<16x16xf32>
    %64 = tpu.matmul %61, %62, %cst_22 {dimension_numbers = #tpu.dot_dimension_numbers<[1], [1], [0], [0], [0, 0, 1, 0], [], []>} : vector<16x8xf32>, vector<16x8xf32>, vector<16x16xf32> -> vector<16x16xf32>
    %cst_23 = arith.constant 0.353553385 : f32
    %65 = vector.broadcast %cst_23 : f32 to vector<16x16xf32>
    %66 = arith.mulf %64, %65 : vector<16x16xf32>
    %cst_24 = arith.constant dense<0xFF800000> : vector<16xf32>
    %67 = vector.multi_reduction <maximumf>, %66, %cst_24 [1] : vector<16x16xf32> to vector<16xf32>
    %68 = vector.shape_cast %67 : vector<16xf32> to vector<16x1xf32>
    %69 = vector.broadcast %68 : vector<16x1xf32> to vector<16x16xf32>
    %70 = arith.subf %66, %69 : vector<16x16xf32>
    %71 = math.exp %70 : vector<16x16xf32>
    %cst_25 = arith.constant dense<0.000000e+00> : vector<16xf32>
    %72 = vector.multi_reduction <add>, %71, %cst_25 [1] : vector<16x16xf32> to vector<16xf32>
    %73 = vector.shape_cast %72 : vector<16xf32> to vector<16x1xf32>
    %74 = tpu.reciprocal %73 {approx = true} : vector<16x1xf32> -> vector<16x1xf32>
    %75 = vector.broadcast %74 : vector<16x1xf32> to vector<16x16xf32>
    %76 = arith.mulf %71, %75 : vector<16x16xf32>
    %cst_26 = arith.constant dense<0.000000e+00> : vector<16x8xf32>
    %77 = tpu.matmul %76, %63, %cst_26 {dimension_numbers = #tpu.dot_dimension_numbers<[1], [0], [0], [1], [0, 0, 1, 1], [], []>} : vector<16x16xf32>, vector<16x8xf32>, vector<16x8xf32> -> vector<16x8xf32>
    %78 = vector.extract_strided_slice %26 {offsets = [0, 24], sizes = [16, 8], strides = [1, 1]} : vector<32x96xf32> to vector<16x8xf32>
    %79 = vector.extract_strided_slice %26 {offsets = [0, 56], sizes = [16, 8], strides = [1, 1]} : vector<32x96xf32> to vector<16x8xf32>
    %80 = vector.extract_strided_slice %26 {offsets = [0, 88], sizes = [16, 8], strides = [1, 1]} : vector<32x96xf32> to vector<16x8xf32>
    %cst_27 = arith.constant dense<0.000000e+00> : vector<16x16xf32>
    %81 = tpu.matmul %78, %79, %cst_27 {dimension_numbers = #tpu.dot_dimension_numbers<[1], [1], [0], [0], [0, 0, 1, 0], [], []>} : vector<16x8xf32>, vector<16x8xf32>, vector<16x16xf32> -> vector<16x16xf32>
    %cst_28 = arith.constant 0.353553385 : f32
    %82 = vector.broadcast %cst_28 : f32 to vector<16x16xf32>
    %83 = arith.mulf %81, %82 : vector<16x16xf32>
    %cst_29 = arith.constant dense<0xFF800000> : vector<16xf32>
    %84 = vector.multi_reduction <maximumf>, %83, %cst_29 [1] : vector<16x16xf32> to vector<16xf32>
    %85 = vector.shape_cast %84 : vector<16xf32> to vector<16x1xf32>
    %86 = vector.broadcast %85 : vector<16x1xf32> to vector<16x16xf32>
    %87 = arith.subf %83, %86 : vector<16x16xf32>
    %88 = math.exp %87 : vector<16x16xf32>
    %cst_30 = arith.constant dense<0.000000e+00> : vector<16xf32>
    %89 = vector.multi_reduction <add>, %88, %cst_30 [1] : vector<16x16xf32> to vector<16xf32>
    %90 = vector.shape_cast %89 : vector<16xf32> to vector<16x1xf32>
    %91 = tpu.reciprocal %90 {approx = true} : vector<16x1xf32> -> vector<16x1xf32>
    %92 = vector.broadcast %91 : vector<16x1xf32> to vector<16x16xf32>
    %93 = arith.mulf %88, %92 : vector<16x16xf32>
    %cst_31 = arith.constant dense<0.000000e+00> : vector<16x8xf32>
    %94 = tpu.matmul %93, %80, %cst_31 {dimension_numbers = #tpu.dot_dimension_numbers<[1], [0], [0], [1], [0, 0, 1, 1], [], []>} : vector<16x16xf32>, vector<16x8xf32>, vector<16x8xf32> -> vector<16x8xf32>
    %95 = tpu.concatenate %43, %60, %77, %94 in 1 : vector<16x8xf32>, vector<16x8xf32>, vector<16x8xf32>, vector<16x8xf32> -> vector<16x32xf32>
    %96 = vector.extract_strided_slice %26 {offsets = [16, 0], sizes = [16, 8], strides = [1, 1]} : vector<32x96xf32> to vector<16x8xf32>
    %97 = vector.extract_strided_slice %26 {offsets = [16, 32], sizes = [16, 8], strides = [1, 1]} : vector<32x96xf32> to vector<16x8xf32>
    %98 = vector.extract_strided_slice %26 {offsets = [16, 64], sizes = [16, 8], strides = [1, 1]} : vector<32x96xf32> to vector<16x8xf32>
    %cst_32 = arith.constant dense<0.000000e+00> : vector<16x16xf32>
    %99 = tpu.matmul %96, %97, %cst_32 {dimension_numbers = #tpu.dot_dimension_numbers<[1], [1], [0], [0], [0, 0, 1, 0], [], []>} : vector<16x8xf32>, vector<16x8xf32>, vector<16x16xf32> -> vector<16x16xf32>
    %cst_33 = arith.constant 0.353553385 : f32
    %100 = vector.broadcast %cst_33 : f32 to vector<16x16xf32>
    %101 = arith.mulf %99, %100 : vector<16x16xf32>
    %cst_34 = arith.constant dense<0xFF800000> : vector<16xf32>
    %102 = vector.multi_reduction <maximumf>, %101, %cst_34 [1] : vector<16x16xf32> to vector<16xf32>
    %103 = vector.shape_cast %102 : vector<16xf32> to vector<16x1xf32>
    %104 = vector.broadcast %103 : vector<16x1xf32> to vector<16x16xf32>
    %105 = arith.subf %101, %104 : vector<16x16xf32>
    %106 = math.exp %105 : vector<16x16xf32>
    %cst_35 = arith.constant dense<0.000000e+00> : vector<16xf32>
    %107 = vector.multi_reduction <add>, %106, %cst_35 [1] : vector<16x16xf32> to vector<16xf32>
    %108 = vector.shape_cast %107 : vector<16xf32> to vector<16x1xf32>
    %109 = tpu.reciprocal %108 {approx = true} : vector<16x1xf32> -> vector<16x1xf32>
    %110 = vector.broadcast %109 : vector<16x1xf32> to vector<16x16xf32>
    %111 = arith.mulf %106, %110 : vector<16x16xf32>
    %cst_36 = arith.constant dense<0.000000e+00> : vector<16x8xf32>
    %112 = tpu.matmul %111, %98, %cst_36 {dimension_numbers = #tpu.dot_dimension_numbers<[1], [0], [0], [1], [0, 0, 1, 1], [], []>} : vector<16x16xf32>, vector<16x8xf32>, vector<16x8xf32> -> vector<16x8xf32>
    %113 = vector.extract_strided_slice %26 {offsets = [16, 8], sizes = [16, 8], strides = [1, 1]} : vector<32x96xf32> to vector<16x8xf32>
    %114 = vector.extract_strided_slice %26 {offsets = [16, 40], sizes = [16, 8], strides = [1, 1]} : vector<32x96xf32> to vector<16x8xf32>
    %115 = vector.extract_strided_slice %26 {offsets = [16, 72], sizes = [16, 8], strides = [1, 1]} : vector<32x96xf32> to vector<16x8xf32>
    %cst_37 = arith.constant dense<0.000000e+00> : vector<16x16xf32>
    %116 = tpu.matmul %113, %114, %cst_37 {dimension_numbers = #tpu.dot_dimension_numbers<[1], [1], [0], [0], [0, 0, 1, 0], [], []>} : vector<16x8xf32>, vector<16x8xf32>, vector<16x16xf32> -> vector<16x16xf32>
    %cst_38 = arith.constant 0.353553385 : f32
    %117 = vector.broadcast %cst_38 : f32 to vector<16x16xf32>
    %118 = arith.mulf %116, %117 : vector<16x16xf32>
    %cst_39 = arith.constant dense<0xFF800000> : vector<16xf32>
    %119 = vector.multi_reduction <maximumf>, %118, %cst_39 [1] : vector<16x16xf32> to vector<16xf32>
    %120 = vector.shape_cast %119 : vector<16xf32> to vector<16x1xf32>
    %121 = vector.broadcast %120 : vector<16x1xf32> to vector<16x16xf32>
    %122 = arith.subf %118, %121 : vector<16x16xf32>
    %123 = math.exp %122 : vector<16x16xf32>
    %cst_40 = arith.constant dense<0.000000e+00> : vector<16xf32>
    %124 = vector.multi_reduction <add>, %123, %cst_40 [1] : vector<16x16xf32> to vector<16xf32>
    %125 = vector.shape_cast %124 : vector<16xf32> to vector<16x1xf32>
    %126 = tpu.reciprocal %125 {approx = true} : vector<16x1xf32> -> vector<16x1xf32>
    %127 = vector.broadcast %126 : vector<16x1xf32> to vector<16x16xf32>
    %128 = arith.mulf %123, %127 : vector<16x16xf32>
    %cst_41 = arith.constant dense<0.000000e+00> : vector<16x8xf32>
    %129 = tpu.matmul %128, %115, %cst_41 {dimension_numbers = #tpu.dot_dimension_numbers<[1], [0], [0], [1], [0, 0, 1, 1], [], []>} : vector<16x16xf32>, vector<16x8xf32>, vector<16x8xf32> -> vector<16x8xf32>
    %130 = vector.extract_strided_slice %26 {offsets = [16, 16], sizes = [16, 8], strides = [1, 1]} : vector<32x96xf32> to vector<16x8xf32>
    %131 = vector.extract_strided_slice %26 {offsets = [16, 48], sizes = [16, 8], strides = [1, 1]} : vector<32x96xf32> to vector<16x8xf32>
    %132 = vector.extract_strided_slice %26 {offsets = [16, 80], sizes = [16, 8], strides = [1, 1]} : vector<32x96xf32> to vector<16x8xf32>
    %cst_42 = arith.constant dense<0.000000e+00> : vector<16x16xf32>
    %133 = tpu.matmul %130, %131, %cst_42 {dimension_numbers = #tpu.dot_dimension_numbers<[1], [1], [0], [0], [0, 0, 1, 0], [], []>} : vector<16x8xf32>, vector<16x8xf32>, vector<16x16xf32> -> vector<16x16xf32>
    %cst_43 = arith.constant 0.353553385 : f32
    %134 = vector.broadcast %cst_43 : f32 to vector<16x16xf32>
    %135 = arith.mulf %133, %134 : vector<16x16xf32>
    %cst_44 = arith.constant dense<0xFF800000> : vector<16xf32>
    %136 = vector.multi_reduction <maximumf>, %135, %cst_44 [1] : vector<16x16xf32> to vector<16xf32>
    %137 = vector.shape_cast %136 : vector<16xf32> to vector<16x1xf32>
    %138 = vector.broadcast %137 : vector<16x1xf32> to vector<16x16xf32>
    %139 = arith.subf %135, %138 : vector<16x16xf32>
    %140 = math.exp %139 : vector<16x16xf32>
    %cst_45 = arith.constant dense<0.000000e+00> : vector<16xf32>
    %141 = vector.multi_reduction <add>, %140, %cst_45 [1] : vector<16x16xf32> to vector<16xf32>
    %142 = vector.shape_cast %141 : vector<16xf32> to vector<16x1xf32>
    %143 = tpu.reciprocal %142 {approx = true} : vector<16x1xf32> -> vector<16x1xf32>
    %144 = vector.broadcast %143 : vector<16x1xf32> to vector<16x16xf32>
    %145 = arith.mulf %140, %144 : vector<16x16xf32>
    %cst_46 = arith.constant dense<0.000000e+00> : vector<16x8xf32>
    %146 = tpu.matmul %145, %132, %cst_46 {dimension_numbers = #tpu.dot_dimension_numbers<[1], [0], [0], [1], [0, 0, 1, 1], [], []>} : vector<16x16xf32>, vector<16x8xf32>, vector<16x8xf32> -> vector<16x8xf32>
    %147 = vector.extract_strided_slice %26 {offsets = [16, 24], sizes = [16, 8], strides = [1, 1]} : vector<32x96xf32> to vector<16x8xf32>
    %148 = vector.extract_strided_slice %26 {offsets = [16, 56], sizes = [16, 8], strides = [1, 1]} : vector<32x96xf32> to vector<16x8xf32>
    %149 = vector.extract_strided_slice %26 {offsets = [16, 88], sizes = [16, 8], strides = [1, 1]} : vector<32x96xf32> to vector<16x8xf32>
    %cst_47 = arith.constant dense<0.000000e+00> : vector<16x16xf32>
    %150 = tpu.matmul %147, %148, %cst_47 {dimension_numbers = #tpu.dot_dimension_numbers<[1], [1], [0], [0], [0, 0, 1, 0], [], []>} : vector<16x8xf32>, vector<16x8xf32>, vector<16x16xf32> -> vector<16x16xf32>
    %cst_48 = arith.constant 0.353553385 : f32
    %151 = vector.broadcast %cst_48 : f32 to vector<16x16xf32>
    %152 = arith.mulf %150, %151 : vector<16x16xf32>
    %cst_49 = arith.constant dense<0xFF800000> : vector<16xf32>
    %153 = vector.multi_reduction <maximumf>, %152, %cst_49 [1] : vector<16x16xf32> to vector<16xf32>
    %154 = vector.shape_cast %153 : vector<16xf32> to vector<16x1xf32>
    %155 = vector.broadcast %154 : vector<16x1xf32> to vector<16x16xf32>
    %156 = arith.subf %152, %155 : vector<16x16xf32>
    %157 = math.exp %156 : vector<16x16xf32>
    %cst_50 = arith.constant dense<0.000000e+00> : vector<16xf32>
    %158 = vector.multi_reduction <add>, %157, %cst_50 [1] : vector<16x16xf32> to vector<16xf32>
    %159 = vector.shape_cast %158 : vector<16xf32> to vector<16x1xf32>
    %160 = tpu.reciprocal %159 {approx = true} : vector<16x1xf32> -> vector<16x1xf32>
    %161 = vector.broadcast %160 : vector<16x1xf32> to vector<16x16xf32>
    %162 = arith.mulf %157, %161 : vector<16x16xf32>
    %cst_51 = arith.constant dense<0.000000e+00> : vector<16x8xf32>
    %163 = tpu.matmul %162, %149, %cst_51 {dimension_numbers = #tpu.dot_dimension_numbers<[1], [0], [0], [1], [0, 0, 1, 1], [], []>} : vector<16x16xf32>, vector<16x8xf32>, vector<16x8xf32> -> vector<16x8xf32>
    %164 = tpu.concatenate %112, %129, %146, %163 in 1 : vector<16x8xf32>, vector<16x8xf32>, vector<16x8xf32>, vector<16x8xf32> -> vector<16x32xf32>
    %165 = tpu.concatenate %95, %164 in 0 : vector<16x32xf32>, vector<16x32xf32> -> vector<32x32xf32>
    %c0_52 = arith.constant 0 : index
    %c0_53 = arith.constant 0 : index
    %166 = vector.load %arg6[%c0_52, %c0_53] : memref<1x32xf32, #tpu.memory_space<vmem>>, vector<1x32xf32>
    %167 = vector.broadcast %166 : vector<1x32xf32> to vector<32x32xf32>
    %168 = arith.addf %0, %167 : vector<32x32xf32>
    %c0_54 = arith.constant 0 : index
    %c0_55 = arith.constant 0 : index
    %169 = vector.load %arg5[%c0_54, %c0_55] : memref<32x32xf32, #tpu.memory_space<vmem>>, vector<32x32xf32>
    %cst_56 = arith.constant dense<0.000000e+00> : vector<32x32xf32>
    %170 = tpu.matmul %165, %169, %cst_56 {dimension_numbers = #tpu.dot_dimension_numbers<[1], [0], [0], [1], [0, 0, 1, 1], [], []>} : vector<32x32xf32>, vector<32x32xf32>, vector<32x32xf32> -> vector<32x32xf32>
    %171 = arith.addf %168, %170 : vector<32x32xf32>
    %c0_57 = arith.constant 0 : index
    %c0_58 = arith.constant 0 : index
    %172 = vector.load %arg7[%c0_57, %c0_58] : memref<32x32xf32, #tpu.memory_space<vmem>>, vector<32x32xf32>
    tpu.vector_store %arg7[%c0_57, %c0_58], %171 {strides = array<i32>} : memref<32x32xf32, #tpu.memory_space<vmem>>, vector<32x32xf32>,
    return
  }
  func.func @transform_0(%arg0: i32) -> (i32, i32) {
    %c0_i32 = arith.constant 0 : i32
    %c0_i32_0 = arith.constant 0 : i32
    %c0_i32_1 = arith.constant 0 : i32
    return %c0_i32, %c0_i32_0 : i32, i32
  }
  func.func @transform_1(%arg0: i32) -> (i32, i32) {
    %c0_i32 = arith.constant 0 : i32
    %c0_i32_0 = arith.constant 0 : i32
    %c0_i32_1 = arith.constant 0 : i32
    return %c0_i32, %c0_i32_0 : i32, i32
  }
  func.func @transform_2(%arg0: i32) -> (i32, i32) {
    %c0_i32 = arith.constant 0 : i32
    %c0_i32_0 = arith.constant 0 : i32
    %c0_i32_1 = arith.constant 0 : i32
    return %c0_i32, %c0_i32_0 : i32, i32
  }
  func.func @transform_3(%arg0: i32) -> (i32, i32) {
    %c0_i32 = arith.constant 0 : i32
    %c0_i32_0 = arith.constant 0 : i32
    %c0_i32_1 = arith.constant 0 : i32
    return %c0_i32, %c0_i32_0 : i32, i32
  }
  func.func @transform_4(%arg0: i32) -> (i32, i32) {
    %c0_i32 = arith.constant 0 : i32
    %c0_i32_0 = arith.constant 0 : i32
    %c0_i32_1 = arith.constant 0 : i32
    return %c0_i32, %c0_i32_0 : i32, i32
  }
  func.func @transform_5(%arg0: i32) -> (i32, i32) {
    %c0_i32 = arith.constant 0 : i32
    %c0_i32_0 = arith.constant 0 : i32
    %c0_i32_1 = arith.constant 0 : i32
    return %c0_i32, %c0_i32_0 : i32, i32
  }
  func.func @transform_6(%arg0: i32) -> (i32, i32) {
    %c0_i32 = arith.constant 0 : i32
    %c0_i32_0 = arith.constant 0 : i32
    %c0_i32_1 = arith.constant 0 : i32
    return %c0_i32, %c0_i32_0 : i32, i32
  }
}

</mosaic_0001>

<llo_original>
// kernel: attention_forward.1
$region0: #{attention_forward.1}
  #allocation0 [shape = 'u32[]', space=smem, size = 0x4, offset = 0x4, fixed_abs, tag = 'smem constant byte address 0x4 - core index']
  #allocation1 [shape = 'u32[144,128]{1,0:T(1,128)}', space=vmem, size = 0x12000, scoped, tag = 'internal scratch']
  %s0 = inlined_call_operand.hbm [shape: f32[32,32], index: 0, kind: input, shape index: {}]
  %s1 = inlined_call_operand.vmem [shape: f32[1,32], index: 1, kind: input, shape index: {}]
  %s2 = inlined_call_operand.vmem [shape: f32[1,32], index: 2, kind: input, shape index: {}]
  %s3 = inlined_call_operand.hbm [shape: f32[32,96], index: 3, kind: input, shape index: {}]
  %s4 = inlined_call_operand.hbm [shape: f32[32,32], index: 4, kind: input, shape index: {}]
  %s5 = inlined_call_operand.vmem [shape: f32[1,32], index: 5, kind: input, shape index: {}]
  %s6 = inlined_call_operand.hbm [shape: f32[32,32], index: 6, kind: output, shape index: {}]
  %s7 = sld [smem:[#allocation0]]
  $region46: #{attention_forward.1} parent=0
    _
  %s9 = ssub.s32 1, %s7
  %s10 = scalar_select 0, %s9, %s7
  $region1: #{attention_forward.1} parent=0
    #allocation2 [shape = 'u8[16384]{0}', space=vmem, size = 0x4000, scoped, tag = 'input window, operand 0, single buffered']
    #allocation3 [shape = 's32[1]{0}', space=sflag, size = 0x4, scoped, tag = 'scoped memory for attention_forward.1']
    #allocation4 [shape = 's32[1]{0}', space=sflag, size = 0x4, scoped, tag = 'scoped memory for attention_forward.1']
    #allocation5 [shape = 'u8[16384]{0}', space=vmem, size = 0x4000, scoped, tag = 'input window, operand 3, single buffered']
    #allocation6 [shape = 's32[1]{0}', space=sflag, size = 0x4, scoped, tag = 'scoped memory for attention_forward.1']
    #allocation7 [shape = 'u8[16384]{0}', space=vmem, size = 0x4000, scoped, tag = 'input window, operand 4, single buffered']
    #allocation8 [shape = 'u8[16384]{0}', space=vmem, size = 0x4000, scoped, tag = 'output window, operand 0, single buffered']
    %11 = vsyncpa [#allocation3], 0
    %12 = vsyncpa [#allocation6], 0
    %13 = vsyncpa [#allocation4], 0
    // Predicated region
    $region2: #{attention_forward.1} parent=1 // pred_check
      _
    $region3: #{attention_forward.1} parent=1 // pred_check_branch
      %15 = sbr.rel (0) target = $region5
    $region4: #{attention_forward.1} parent=1 // pred_region
      %s17 = ssub.s32 512, 512
      %18 = vsyncadd [#allocation3], %s17
      %s19 = sshll.u32 [#allocation2], 4
      %s20 = int_to_ptr.vmem [resolvable:$true] %s19
      %25 = dma.hbm_to_vmem [thread:$0]  %s0, 512, %s20, [#allocation3], 128, 128, 8
    $region5: #{attention_forward.1} parent=1 // pred_fallthru
      _
    // Predicated region
    $region6: #{attention_forward.1} parent=1 // pred_check
      _
    $region7: #{attention_forward.1} parent=1 // pred_check_branch
      %27 = sbr.rel (0) target = $region9
    $region8: #{attention_forward.1} parent=1 // pred_region
      _
    $region9: #{attention_forward.1} parent=1 // pred_fallthru
      _
    // Predicated region
    $region10: #{attention_forward.1} parent=1 // pred_check
      _
    $region11: #{attention_forward.1} parent=1 // pred_check_branch
      %29 = sbr.rel (0) target = $region13
    $region12: #{attention_forward.1} parent=1 // pred_region
      _
    $region13: #{attention_forward.1} parent=1 // pred_fallthru
      _
    // Predicated region
    $region14: #{attention_forward.1} parent=1 // pred_check
      _
    $region15: #{attention_forward.1} parent=1 // pred_check_branch
      %31 = sbr.rel (0) target = $region17
    $region16: #{attention_forward.1} parent=1 // pred_region
      %s33 = ssub.s32 512, 512
      %34 = vsyncadd [#allocation6], %s33
      %s35 = sshll.u32 [#allocation5], 4
      %s36 = int_to_ptr.vmem [resolvable:$true] %s35
      %41 = dma.hbm_to_vmem [thread:$0]  %s3, 512, %s36, [#allocation6], 128, 128, 8
    $region17: #{attention_forward.1} parent=1 // pred_fallthru
      _
    // Predicated region
    $region18: #{attention_forward.1} parent=1 // pred_check
      _
    $region19: #{attention_forward.1} parent=1 // pred_check_branch
      %43 = sbr.rel (0) target = $region21
    $region20: #{attention_forward.1} parent=1 // pred_region
      %s45 = ssub.s32 512, 512
      %46 = vsyncadd [#allocation6], %s45
      %s47 = sshll.u32 [#allocation7], 4
      %s48 = int_to_ptr.vmem [resolvable:$true] %s47
      %53 = dma.hbm_to_vmem [thread:$0]  %s4, 512, %s48, [#allocation6], 128, 128, 8
    $region21: #{attention_forward.1} parent=1 // pred_fallthru
      _
    // Predicated region
    $region22: #{attention_forward.1} parent=1 // pred_check
      _
    $region23: #{attention_forward.1} parent=1 // pred_check_branch
      %55 = sbr.rel (0) target = $region25
    $region24: #{attention_forward.1} parent=1 // pred_region
      _
    $region25: #{attention_forward.1} parent=1 // pred_fallthru
      _
    // Predicated region
    $region26: #{attention_forward.1} parent=1 // pred_check
      _
    $region27: #{attention_forward.1} parent=1 // pred_check_branch
      %57 = sbr.rel (0) target = $region29
    $region28: #{attention_forward.1} parent=1 // pred_region
      %58 = dma.done [#allocation3], 512
    $region29: #{attention_forward.1} parent=1 // pred_fallthru
      _
    // Predicated region
    $region30: #{attention_forward.1} parent=1 // pred_check
      _
    $region31: #{attention_forward.1} parent=1 // pred_check_branch
      %60 = sbr.rel (0) target = $region33
    $region32: #{attention_forward.1} parent=1 // pred_region
      %61 = dma.done [#allocation6], 512
    $region33: #{attention_forward.1} parent=1 // pred_fallthru
      _
    // Predicated region
    $region34: #{attention_forward.1} parent=1 // pred_check
      _
    $region35: #{attention_forward.1} parent=1 // pred_check_branch
      %63 = sbr.rel (0) target = $region37
    $region36: #{attention_forward.1} parent=1 // pred_region
      %64 = dma.done [#allocation6], 512
    $region37: #{attention_forward.1} parent=1 // pred_fallthru
      _
    %v65 = vld [vmem:[#allocation2] sm:$0xff]
    %v66 = vld [vmem:[#allocation2 + $0x8] sm:$0xff]
    %v67 = vld [vmem:[#allocation2 + $0x10] sm:$0xff]
    %v68 = vld [vmem:[#allocation2 + $0x18] sm:$0xff]
    %vm69 = vcmask 261120
    %v70 = vsel %vm69, %v65, 0.0
    %71 = vadd.xlane.f32.xlu0 %v70
    %v72 = vpop.xlane.xlu0 %71
    %v73 = vsel %vm69, %v66, 0.0
    %74 = vadd.xlane.f32.xlu0 %v73
    %v75 = vpop.xlane.xlu0 %74
    %v76 = vsel %vm69, %v67, 0.0
    %77 = vadd.xlane.f32.xlu0 %v76
    %v78 = vpop.xlane.xlu0 %77
    %v79 = vsel %vm69, %v68, 0.0
    %80 = vadd.xlane.f32.xlu0 %v79
    %v81 = vpop.xlane.xlu0 %80
    %v82 = vrcp.pop 32.0
    %v83 = vmul.f32 %v72, %v82
    %v84 = vmul.f32 %v75, %v82
    %v85 = vmul.f32 %v78, %v82
    %v86 = vmul.f32 %v81, %v82
    %v87 = vmul.f32 %v65, %v65
    %v88 = vmul.f32 %v66, %v66
    %v89 = vmul.f32 %v67, %v67
    %v90 = vmul.f32 %v68, %v68
    %v91 = vsel %vm69, %v87, 0.0
    %92 = vadd.xlane.f32.xlu0 %v91
    %v93 = vpop.xlane.xlu0 %92
    %v94 = vsel %vm69, %v88, 0.0
    %95 = vadd.xlane.f32.xlu0 %v94
    %v96 = vpop.xlane.xlu0 %95
    %v97 = vsel %vm69, %v89, 0.0
    %98 = vadd.xlane.f32.xlu0 %v97
    %v99 = vpop.xlane.xlu0 %98
    %v100 = vsel %vm69, %v90, 0.0
    %101 = vadd.xlane.f32.xlu0 %v100
    %v102 = vpop.xlane.xlu0 %101
    %v103 = vmul.f32 %v93, %v82
    %v104 = vmul.f32 %v96, %v82
    %v105 = vmul.f32 %v99, %v82
    %v106 = vmul.f32 %v102, %v82
    %v107 = vmul.f32 %v83, %v83
    %v108 = vmul.f32 %v84, %v84
    %v109 = vmul.f32 %v85, %v85
    %v110 = vmul.f32 %v86, %v86
    %v111 = vsub.f32 %v103, %v107
    %v112 = vsub.f32 %v104, %v108
    %v113 = vsub.f32 %v105, %v109
    %v114 = vsub.f32 %v106, %v110
    %v115 = vsub.f32 %v65, %v83
    %v116 = vsub.f32 %v66, %v84
    %v117 = vsub.f32 %v67, %v85
    %v118 = vsub.f32 %v68, %v86
    %v119 = vadd.f32 %v111, 1e-05
    %v120 = vadd.f32 %v112, 1e-05
    %v121 = vadd.f32 %v113, 1e-05
    %v122 = vadd.f32 %v114, 1e-05
    %v123 = vrsqrt.pop %v119
    %v124 = vrsqrt.pop %v120
    %v125 = vrsqrt.pop %v121
    %v126 = vrsqrt.pop %v122
    %v127 = vmul.f32 %v115, %v123
    %v128 = vmul.f32 %v116, %v124
    %v129 = vmul.f32 %v117, %v125
    %v130 = vmul.f32 %v118, %v126
    %v131 = vld [vmem:[%s1] sm:$0x1]
    %v133 = vlaneseq
    %v134 = vshrl.u32 %v133, 7
    %v135 = vsub.s32 0, %v134
    %v136 = vrot.slane %v131, %v135
    %v138 = vmul.f32 %v127, %v136
    %v139 = vmul.f32 %v128, %v136
    %v140 = vmul.f32 %v129, %v136
    %v141 = vmul.f32 %v130, %v136
    %v142 = vld [vmem:[%s2] sm:$0x1]
    %v144 = vlaneseq
    %v145 = vshrl.u32 %v144, 7
    %v146 = vsub.s32 0, %v145
    %v147 = vrot.slane %v142, %v146
    %v149 = vadd.f32 %v138, %v147
    %v150 = vadd.f32 %v139, %v147
    %v151 = vadd.f32 %v140, %v147
    %v152 = vadd.f32 %v141, %v147
    %v153 = vld [vmem:[#allocation5] sm:$0xff]
    %v154 = vld [vmem:[#allocation5 + $0x8] sm:$0xff]
    %v155 = vld [vmem:[#allocation5 + $0x10] sm:$0xff]
    %v156 = vld [vmem:[#allocation5 + $0x18] sm:$0xff]
    %v158 = vsel %vm69, %v149, 0
    %v161 = vsel %vm69, %v150, 0
    %v164 = vsel %vm69, %v151, 0
    %v167 = vsel %vm69, %v152, 0
    %169 = vmatprep.subr.mxu0 0.0
    %170 = vmatpush1.msra.mxu0 %v153
    %171 = vmatprep.subr.mxu0 0.0
    %172 = vmatpush1.msra.mxu0 %v154
    %173 = vmatprep.subr.mxu0 0.0
    %174 = vmatpush1.msra.mxu0 %v155
    %175 = vmatprep.subr.mxu0 0.0
    %176 = vmatpush1.msra.mxu0 %v156
    %177 = vmatprep.subr.mxu0 0.0
    %178 = vmatpush1.msra.mxu0 0.0
    %179 = vmatprep.subr.mxu0 0.0
    %180 = vmatpush1.msra.mxu0 0.0
    %181 = vmatprep.subr.mxu0 0.0
    %182 = vmatpush1.msra.mxu0 0.0
    %183 = vmatprep.subr.mxu0 0.0
    %184 = vmatpush1.msra.mxu0 0.0
    %185 = vmatprep.subr.mxu0 0.0
    %186 = vmatpush1.msra.mxu0 0.0
    %187 = vmatprep.subr.mxu0 0.0
    %188 = vmatpush1.msra.mxu0 0.0
    %189 = vmatprep.subr.mxu0 0.0
    %190 = vmatpush1.msra.mxu0 0.0
    %191 = vmatprep.subr.mxu0 0.0
    %192 = vmatpush1.msra.mxu0 0.0
    %193 = vmatprep.subr.mxu0 0.0
    %194 = vmatpush1.msra.mxu0 0.0
    %195 = vmatprep.subr.mxu0 0.0
    %196 = vmatpush1.msra.mxu0 0.0
    %197 = vmatprep.subr.mxu0 0.0
    %198 = vmatpush1.msra.mxu0 0.0
    %199 = vmatprep.subr.mxu0 0.0
    %200 = vmatpush1.msra.mxu0 0.0
    %201 = vmatprep.subr.mxu0 0.0
    %202 = vmatpush1.msra.mxu0 0.0
    %203 = vmatprep.subr.mxu0 0.0
    %204 = vmatpush1.msra.mxu0 0.0
    %205 = vmatprep.subr.mxu0 0.0
    %206 = vmatpush1.msra.mxu0 0.0
    %207 = vmatprep.subr.mxu0 0.0
    %208 = vmatpush1.msra.mxu0 0.0
    %209 = vmatprep.subr.mxu0 0.0
    %210 = vmatpush1.msra.mxu0 0.0
    %211 = vmatprep.subr.mxu0 0.0
    %212 = vmatpush1.msra.mxu0 0.0
    %213 = vmatprep.subr.mxu0 0.0
    %214 = vmatpush1.msra.mxu0 0.0
    %215 = vmatprep.subr.mxu0 0.0
    %216 = vmatpush1.msra.mxu0 0.0
    %217 = vmatprep.subr.mxu0 0.0
    %218 = vmatpush1.msra.mxu0 0.0
    %219 = vmatprep.subr.mxu0 0.0
    %220 = vmatpush1.msra.mxu0 0.0
    %221 = vmatprep.subr.mxu0 0.0
    %222 = vmatpush1.msra.mxu0 0.0
    %223 = vmatprep.subr.mxu0 0.0
    %224 = vmatpush1.msra.mxu0 0.0
    %225 = vmatprep.subr.mxu0 0.0
    %226 = vmatpush1.msra.mxu0 0.0
    %227 = vmatprep.subr.mxu0 0.0
    %228 = vmatpush1.msra.mxu0 0.0
    %229 = vmatprep.subr.mxu0 0.0
    %230 = vmatpush1.msra.mxu0 0.0
    %231 = vmatprep.subr.mxu0 0.0
    %232 = vmatpush1.msra.mxu0 0.0
    %233 = vmatprep.mubr.f32.mxu0 0.0
    %234 = vmatmul.mubr.f32.gmra.mrb[0].mxu0 %v158
    %v235 = vpop.f32.mrb[0].mxu0
    %v236 = vadd.f32 0.0, %v235
    %v237 = vpop.f32.mrb[0].mxu0
    %238 = vmatprep.mubr.f32.mxu0 0.0
    %239 = vmatmul.mubr.f32.gmra.mrb[0].mxu0 %v161
    %v240 = vpop.f32.mrb[0].mxu0
    %v241 = vadd.f32 0.0, %v240
    %v242 = vpop.f32.mrb[0].mxu0
    %243 = vmatprep.mubr.f32.mxu0 0.0
    %244 = vmatmul.mubr.f32.gmra.mrb[0].mxu0 %v164
    %v245 = vpop.f32.mrb[0].mxu0
    %v246 = vadd.f32 0.0, %v245
    %v247 = vpop.f32.mrb[0].mxu0
    %248 = vmatprep.mubr.f32.mxu0 0.0
    %249 = vmatmul.mubr.f32.gmra.mrb[0].mxu0 %v167
    %v250 = vpop.f32.mrb[0].mxu0
    %v251 = vadd.f32 0.0, %v250
    %v252 = vpop.f32.mrb[0].mxu0
    %253 = vdwg.mxu0
    %256 = vrot.lane.b32.xlu0 %v236, 96
    %v257 = vpop.permute.xlu0 %256
    %258 = vrot.lane.b32.xlu0 %v241, 96
    %v259 = vpop.permute.xlu0 %258
    %vm260 = vcmask 64512
    %v261 = vsel %vm260, %v236, 0
    %v263 = vsel %vm260, %v241, 0
    %v265 = vsel %vm260, %v257, 0
    %v267 = vsel %vm260, %v259, 0
    %269 = vmatprep.subr.mxu0 0.0
    %270 = vmatpush1.xpose.msra.mxu0 %v265
    %271 = vmatprep.subr.mxu0 0.0
    %272 = vmatpush1.xpose.msra.mxu0 %v267
    %273 = vmatprep.subr.mxu0 0.0
    %274 = vmatpush1.xpose.msra.mxu0 0.0
    %275 = vmatprep.subr.mxu0 0.0
    %276 = vmatpush1.xpose.msra.mxu0 0.0
    %277 = vmatprep.subr.mxu0 0.0
    %278 = vmatpush1.xpose.msra.mxu0 0.0
    %279 = vmatprep.subr.mxu0 0.0
    %280 = vmatpush1.xpose.msra.mxu0 0.0
    %281 = vmatprep.subr.mxu0 0.0
    %282 = vmatpush1.xpose.msra.mxu0 0.0
    %283 = vmatprep.subr.mxu0 0.0
    %284 = vmatpush1.xpose.msra.mxu0 0.0
    %285 = vmatprep.subr.mxu0 0.0
    %286 = vmatpush1.xpose.msra.mxu0 0.0
    %287 = vmatprep.subr.mxu0 0.0
    %288 = vmatpush1.xpose.msra.mxu0 0.0
    %289 = vmatprep.subr.mxu0 0.0
    %290 = vmatpush1.xpose.msra.mxu0 0.0
    %291 = vmatprep.subr.mxu0 0.0
    %292 = vmatpush1.xpose.msra.mxu0 0.0
    %293 = vmatprep.subr.mxu0 0.0
    %294 = vmatpush1.xpose.msra.mxu0 0.0
    %295 = vmatprep.subr.mxu0 0.0
    %296 = vmatpush1.xpose.msra.mxu0 0.0
    %297 = vmatprep.subr.mxu0 0.0
    %298 = vmatpush1.xpose.msra.mxu0 0.0
    %299 = vmatprep.subr.mxu0 0.0
    %300 = vmatpush1.xpose.msra.mxu0 0.0
    %301 = vmatprep.subr.mxu0 0.0
    %302 = vmatpush1.xpose.msra.mxu0 0.0
    %303 = vmatprep.subr.mxu0 0.0
    %304 = vmatpush1.xpose.msra.mxu0 0.0
    %305 = vmatprep.subr.mxu0 0.0
    %306 = vmatpush1.xpose.msra.mxu0 0.0
    %307 = vmatprep.subr.mxu0 0.0
    %308 = vmatpush1.xpose.msra.mxu0 0.0
    %309 = vmatprep.subr.mxu0 0.0
    %310 = vmatpush1.xpose.msra.mxu0 0.0
    %311 = vmatprep.subr.mxu0 0.0
    %312 = vmatpush1.xpose.msra.mxu0 0.0
    %313 = vmatprep.subr.mxu0 0.0
    %314 = vmatpush1.xpose.msra.mxu0 0.0
    %315 = vmatprep.subr.mxu0 0.0
    %316 = vmatpush1.xpose.msra.mxu0 0.0
    %317 = vmatprep.subr.mxu0 0.0
    %318 = vmatpush1.xpose.msra.mxu0 0.0
    %319 = vmatprep.subr.mxu0 0.0
    %320 = vmatpush1.xpose.msra.mxu0 0.0
    %321 = vmatprep.subr.mxu0 0.0
    %322 = vmatpush1.xpose.msra.mxu0 0.0
    %323 = vmatprep.subr.mxu0 0.0
    %324 = vmatpush1.xpose.msra.mxu0 0.0
    %325 = vmatprep.subr.mxu0 0.0
    %326 = vmatpush1.xpose.msra.mxu0 0.0
    %327 = vmatprep.subr.mxu0 0.0
    %328 = vmatpush1.xpose.msra.mxu0 0.0
    %329 = vmatprep.subr.mxu0 0.0
    %330 = vmatpush1.xpose.msra.mxu0 0.0
    %331 = vmatprep.subr.mxu0 0.0
    %332 = vmatpush1.xpose.msra.mxu0 0.0
    %333 = vmatprep.mubr.f32.mxu0 0.0
    %334 = vmatmul.mubr.f32.gmra.mrb[0].mxu0 %v261
    %v335 = vpop.f32.mrb[0].mxu0
    %v336 = vadd.f32 0.0, %v335
    %v337 = vpop.f32.mrb[0].mxu0
    %338 = vmatprep.mubr.f32.mxu0 0.0
    %339 = vmatmul.mubr.f32.gmra.mrb[0].mxu0 %v263
    %v340 = vpop.f32.mrb[0].mxu0
    %v341 = vadd.f32 0.0, %v340
    %v342 = vpop.f32.mrb[0].mxu0
    %343 = vdwg.mxu0
    %v344 = vmul.f32 %v336, 0.35355338
    %v345 = vmul.f32 %v341, 0.35355338
    %vm346 = vcmask 130048
    %v347 = vsel %vm346, %v344, -inf
    %348 = vmax.xlane.f32.xlu0 %v347
    %v349 = vpop.xlane.xlu0 %348
    %v350 = vsel %vm346, %v345, -inf
    %351 = vmax.xlane.f32.xlu0 %v350
    %v352 = vpop.xlane.xlu0 %351
    %v353 = vsub.f32 %v344, %v349
    %v354 = vsub.f32 %v345, %v352
    %v355 = vmul.f32 %v353, 1.442695
    %v356 = vpow.pop %v355
    %v357 = vmul.f32 %v354, 1.442695
    %v358 = vpow.pop %v357
    %v359 = vsel %vm346, %v356, 0.0
    %360 = vadd.xlane.f32.xlu0 %v359
    %v361 = vpop.xlane.xlu0 %360
    %v362 = vsel %vm346, %v358, 0.0
    %363 = vadd.xlane.f32.xlu0 %v362
    %v364 = vpop.xlane.xlu0 %363
    %v365 = vrcp.pop %v361
    %v366 = vrcp.pop %v364
    %v367 = vmul.f32 %v356, %v365
    %v368 = vmul.f32 %v358, %v366
    %369 = vrot.lane.b32.xlu0 %v236, 64
    %v370 = vpop.permute.xlu0 %369
    %371 = vrot.lane.b32.xlu0 %v241, 64
    %v372 = vpop.permute.xlu0 %371
    %v376 = vsel %vm346, %v367, 0
    %v379 = vsel %vm346, %v368, 0
    %381 = vmatprep.subr.mxu0 0.0
    %382 = vmatpush1.msra.mxu0 %v370
    %383 = vmatprep.subr.mxu0 0.0
    %384 = vmatpush1.msra.mxu0 %v372
    %385 = vmatprep.subr.mxu0 0.0
    %386 = vmatpush1.msra.mxu0 0.0
    %387 = vmatprep.subr.mxu0 0.0
    %388 = vmatpush1.msra.mxu0 0.0
    %389 = vmatprep.subr.mxu0 0.0
    %390 = vmatpush1.msra.mxu0 0.0
    %391 = vmatprep.subr.mxu0 0.0
    %392 = vmatpush1.msra.mxu0 0.0
    %393 = vmatprep.subr.mxu0 0.0
    %394 = vmatpush1.msra.mxu0 0.0
    %395 = vmatprep.subr.mxu0 0.0
    %396 = vmatpush1.msra.mxu0 0.0
    %397 = vmatprep.subr.mxu0 0.0
    %398 = vmatpush1.msra.mxu0 0.0
    %399 = vmatprep.subr.mxu0 0.0
    %400 = vmatpush1.msra.mxu0 0.0
    %401 = vmatprep.subr.mxu0 0.0
    %402 = vmatpush1.msra.mxu0 0.0
    %403 = vmatprep.subr.mxu0 0.0
    %404 = vmatpush1.msra.mxu0 0.0
    %405 = vmatprep.subr.mxu0 0.0
    %406 = vmatpush1.msra.mxu0 0.0
    %407 = vmatprep.subr.mxu0 0.0
    %408 = vmatpush1.msra.mxu0 0.0
    %409 = vmatprep.subr.mxu0 0.0
    %410 = vmatpush1.msra.mxu0 0.0
    %411 = vmatprep.subr.mxu0 0.0
    %412 = vmatpush1.msra.mxu0 0.0
    %413 = vmatprep.subr.mxu0 0.0
    %414 = vmatpush1.msra.mxu0 0.0
    %415 = vmatprep.subr.mxu0 0.0
    %416 = vmatpush1.msra.mxu0 0.0
    %417 = vmatprep.subr.mxu0 0.0
    %418 = vmatpush1.msra.mxu0 0.0
    %419 = vmatprep.subr.mxu0 0.0
    %420 = vmatpush1.msra.mxu0 0.0
    %421 = vmatprep.subr.mxu0 0.0
    %422 = vmatpush1.msra.mxu0 0.0
    %423 = vmatprep.subr.mxu0 0.0
    %424 = vmatpush1.msra.mxu0 0.0
    %425 = vmatprep.subr.mxu0 0.0
    %426 = vmatpush1.msra.mxu0 0.0
    %427 = vmatprep.subr.mxu0 0.0
    %428 = vmatpush1.msra.mxu0 0.0
    %429 = vmatprep.subr.mxu0 0.0
    %430 = vmatpush1.msra.mxu0 0.0
    %431 = vmatprep.subr.mxu0 0.0
    %432 = vmatpush1.msra.mxu0 0.0
    %433 = vmatprep.subr.mxu0 0.0
    %434 = vmatpush1.msra.mxu0 0.0
    %435 = vmatprep.subr.mxu0 0.0
    %436 = vmatpush1.msra.mxu0 0.0
    %437 = vmatprep.subr.mxu0 0.0
    %438 = vmatpush1.msra.mxu0 0.0
    %439 = vmatprep.subr.mxu0 0.0
    %440 = vmatpush1.msra.mxu0 0.0
    %441 = vmatprep.subr.mxu0 0.0
    %442 = vmatpush1.msra.mxu0 0.0
    %443 = vmatprep.subr.mxu0 0.0
    %444 = vmatpush1.msra.mxu0 0.0
    %445 = vmatprep.mubr.f32.mxu0 0.0
    %446 = vmatmul.mubr.f32.gmra.mrb[0].mxu0 %v376
    %v447 = vpop.f32.mrb[0].mxu0
    %v448 = vadd.f32 0.0, %v447
    %v449 = vpop.f32.mrb[0].mxu0
    %450 = vmatprep.mubr.f32.mxu0 0.0
    %451 = vmatmul.mubr.f32.gmra.mrb[0].mxu0 %v379
    %v452 = vpop.f32.mrb[0].mxu0
    %v453 = vadd.f32 0.0, %v452
    %v454 = vpop.f32.mrb[0].mxu0
    %455 = vdwg.mxu0
    %456 = vrot.lane.b32.xlu0 %v236, 120
    %v457 = vpop.permute.xlu0 %456
    %458 = vrot.lane.b32.xlu0 %v241, 120
    %v459 = vpop.permute.xlu0 %458
    %460 = vrot.lane.b32.xlu0 %v236, 88
    %v461 = vpop.permute.xlu0 %460
    %462 = vrot.lane.b32.xlu0 %v241, 88
    %v463 = vpop.permute.xlu0 %462
    %v464 = vsel %vm260, %v457, 0
    %v466 = vsel %vm260, %v459, 0
    %v468 = vsel %vm260, %v461, 0
    %v470 = vsel %vm260, %v463, 0
    %472 = vmatprep.subr.mxu0 0.0
    %473 = vmatpush1.xpose.msra.mxu0 %v468
    %474 = vmatprep.subr.mxu0 0.0
    %475 = vmatpush1.xpose.msra.mxu0 %v470
    %476 = vmatprep.subr.mxu0 0.0
    %477 = vmatpush1.xpose.msra.mxu0 0.0
    %478 = vmatprep.subr.mxu0 0.0
    %479 = vmatpush1.xpose.msra.mxu0 0.0
    %480 = vmatprep.subr.mxu0 0.0
    %481 = vmatpush1.xpose.msra.mxu0 0.0
    %482 = vmatprep.subr.mxu0 0.0
    %483 = vmatpush1.xpose.msra.mxu0 0.0
    %484 = vmatprep.subr.mxu0 0.0
    %485 = vmatpush1.xpose.msra.mxu0 0.0
    %486 = vmatprep.subr.mxu0 0.0
    %487 = vmatpush1.xpose.msra.mxu0 0.0
    %488 = vmatprep.subr.mxu0 0.0
    %489 = vmatpush1.xpose.msra.mxu0 0.0
    %490 = vmatprep.subr.mxu0 0.0
    %491 = vmatpush1.xpose.msra.mxu0 0.0
    %492 = vmatprep.subr.mxu0 0.0
    %493 = vmatpush1.xpose.msra.mxu0 0.0
    %494 = vmatprep.subr.mxu0 0.0
    %495 = vmatpush1.xpose.msra.mxu0 0.0
    %496 = vmatprep.subr.mxu0 0.0
    %497 = vmatpush1.xpose.msra.mxu0 0.0
    %498 = vmatprep.subr.mxu0 0.0
    %499 = vmatpush1.xpose.msra.mxu0 0.0
    %500 = vmatprep.subr.mxu0 0.0
    %501 = vmatpush1.xpose.msra.mxu0 0.0
    %502 = vmatprep.subr.mxu0 0.0
    %503 = vmatpush1.xpose.msra.mxu0 0.0
    %504 = vmatprep.subr.mxu0 0.0
    %505 = vmatpush1.xpose.msra.mxu0 0.0
    %506 = vmatprep.subr.mxu0 0.0
    %507 = vmatpush1.xpose.msra.mxu0 0.0
    %508 = vmatprep.subr.mxu0 0.0
    %509 = vmatpush1.xpose.msra.mxu0 0.0
    %510 = vmatprep.subr.mxu0 0.0
    %511 = vmatpush1.xpose.msra.mxu0 0.0
    %512 = vmatprep.subr.mxu0 0.0
    %513 = vmatpush1.xpose.msra.mxu0 0.0
    %514 = vmatprep.subr.mxu0 0.0
    %515 = vmatpush1.xpose.msra.mxu0 0.0
    %516 = vmatprep.subr.mxu0 0.0
    %517 = vmatpush1.xpose.msra.mxu0 0.0
    %518 = vmatprep.subr.mxu0 0.0
    %519 = vmatpush1.xpose.msra.mxu0 0.0
    %520 = vmatprep.subr.mxu0 0.0
    %521 = vmatpush1.xpose.msra.mxu0 0.0
    %522 = vmatprep.subr.mxu0 0.0
    %523 = vmatpush1.xpose.msra.mxu0 0.0
    %524 = vmatprep.subr.mxu0 0.0
    %525 = vmatpush1.xpose.msra.mxu0 0.0
    %526 = vmatprep.subr.mxu0 0.0
    %527 = vmatpush1.xpose.msra.mxu0 0.0
    %528 = vmatprep.subr.mxu0 0.0
    %529 = vmatpush1.xpose.msra.mxu0 0.0
    %530 = vmatprep.subr.mxu0 0.0
    %531 = vmatpush1.xpose.msra.mxu0 0.0
    %532 = vmatprep.subr.mxu0 0.0
    %533 = vmatpush1.xpose.msra.mxu0 0.0
    %534 = vmatprep.subr.mxu0 0.0
    %535 = vmatpush1.xpose.msra.mxu0 0.0
    %536 = vmatprep.mubr.f32.mxu0 0.0
    %537 = vmatmul.mubr.f32.gmra.mrb[0].mxu0 %v464
    %v538 = vpop.f32.mrb[0].mxu0
    %v539 = vadd.f32 0.0, %v538
    %v540 = vpop.f32.mrb[0].mxu0
    %541 = vmatprep.mubr.f32.mxu0 0.0
    %542 = vmatmul.mubr.f32.gmra.mrb[0].mxu0 %v466
    %v543 = vpop.f32.mrb[0].mxu0
    %v544 = vadd.f32 0.0, %v543
    %v545 = vpop.f32.mrb[0].mxu0
    %546 = vdwg.mxu0
    %v547 = vmul.f32 %v539, 0.35355338
    %v548 = vmul.f32 %v544, 0.35355338
    %v549 = vsel %vm346, %v547, -inf
    %550 = vmax.xlane.f32.xlu0 %v549
    %v551 = vpop.xlane.xlu0 %550
    %v552 = vsel %vm346, %v548, -inf
    %553 = vmax.xlane.f32.xlu0 %v552
    %v554 = vpop.xlane.xlu0 %553
    %v555 = vsub.f32 %v547, %v551
    %v556 = vsub.f32 %v548, %v554
    %v557 = vmul.f32 %v555, 1.442695
    %v558 = vpow.pop %v557
    %v559 = vmul.f32 %v556, 1.442695
    %v560 = vpow.pop %v559
    %v561 = vsel %vm346, %v558, 0.0
    %562 = vadd.xlane.f32.xlu0 %v561
    %v563 = vpop.xlane.xlu0 %562
    %v564 = vsel %vm346, %v560, 0.0
    %565 = vadd.xlane.f32.xlu0 %v564
    %v566 = vpop.xlane.xlu0 %565
    %v567 = vrcp.pop %v563
    %v568 = vrcp.pop %v566
    %v569 = vmul.f32 %v558, %v567
    %v570 = vmul.f32 %v560, %v568
    %571 = vrot.lane.b32.xlu0 %v236, 56
    %v572 = vpop.permute.xlu0 %571
    %573 = vrot.lane.b32.xlu0 %v241, 56
    %v574 = vpop.permute.xlu0 %573
    %v578 = vsel %vm346, %v569, 0
    %v581 = vsel %vm346, %v570, 0
    %583 = vmatprep.subr.mxu0 0.0
    %584 = vmatpush1.msra.mxu0 %v572
    %585 = vmatprep.subr.mxu0 0.0
    %586 = vmatpush1.msra.mxu0 %v574
    %587 = vmatprep.subr.mxu0 0.0
    %588 = vmatpush1.msra.mxu0 0.0
    %589 = vmatprep.subr.mxu0 0.0
    %590 = vmatpush1.msra.mxu0 0.0
    %591 = vmatprep.subr.mxu0 0.0
    %592 = vmatpush1.msra.mxu0 0.0
    %593 = vmatprep.subr.mxu0 0.0
    %594 = vmatpush1.msra.mxu0 0.0
    %595 = vmatprep.subr.mxu0 0.0
    %596 = vmatpush1.msra.mxu0 0.0
    %597 = vmatprep.subr.mxu0 0.0
    %598 = vmatpush1.msra.mxu0 0.0
    %599 = vmatprep.subr.mxu0 0.0
    %600 = vmatpush1.msra.mxu0 0.0
    %601 = vmatprep.subr.mxu0 0.0
    %602 = vmatpush1.msra.mxu0 0.0
    %603 = vmatprep.subr.mxu0 0.0
    %604 = vmatpush1.msra.mxu0 0.0
    %605 = vmatprep.subr.mxu0 0.0
    %606 = vmatpush1.msra.mxu0 0.0
    %607 = vmatprep.subr.mxu0 0.0
    %608 = vmatpush1.msra.mxu0 0.0
    %609 = vmatprep.subr.mxu0 0.0
    %610 = vmatpush1.msra.mxu0 0.0
    %611 = vmatprep.subr.mxu0 0.0
    %612 = vmatpush1.msra.mxu0 0.0
    %613 = vmatprep.subr.mxu0 0.0
    %614 = vmatpush1.msra.mxu0 0.0
    %615 = vmatprep.subr.mxu0 0.0
    %616 = vmatpush1.msra.mxu0 0.0
    %617 = vmatprep.subr.mxu0 0.0
    %618 = vmatpush1.msra.mxu0 0.0
    %619 = vmatprep.subr.mxu0 0.0
    %620 = vmatpush1.msra.mxu0 0.0
    %621 = vmatprep.subr.mxu0 0.0
    %622 = vmatpush1.msra.mxu0 0.0
    %623 = vmatprep.subr.mxu0 0.0
    %624 = vmatpush1.msra.mxu0 0.0
    %625 = vmatprep.subr.mxu0 0.0
    %626 = vmatpush1.msra.mxu0 0.0
    %627 = vmatprep.subr.mxu0 0.0
    %628 = vmatpush1.msra.mxu0 0.0
    %629 = vmatprep.subr.mxu0 0.0
    %630 = vmatpush1.msra.mxu0 0.0
    %631 = vmatprep.subr.mxu0 0.0
    %632 = vmatpush1.msra.mxu0 0.0
    %633 = vmatprep.subr.mxu0 0.0
    %634 = vmatpush1.msra.mxu0 0.0
    %635 = vmatprep.subr.mxu0 0.0
    %636 = vmatpush1.msra.mxu0 0.0
    %637 = vmatprep.subr.mxu0 0.0
    %638 = vmatpush1.msra.mxu0 0.0
    %639 = vmatprep.subr.mxu0 0.0
    %640 = vmatpush1.msra.mxu0 0.0
    %641 = vmatprep.subr.mxu0 0.0
    %642 = vmatpush1.msra.mxu0 0.0
    %643 = vmatprep.subr.mxu0 0.0
    %644 = vmatpush1.msra.mxu0 0.0
    %645 = vmatprep.subr.mxu0 0.0
    %646 = vmatpush1.msra.mxu0 0.0
    %647 = vmatprep.mubr.f32.mxu0 0.0
    %648 = vmatmul.mubr.f32.gmra.mrb[0].mxu0 %v578
    %v649 = vpop.f32.mrb[0].mxu0
    %v650 = vadd.f32 0.0, %v649
    %v651 = vpop.f32.mrb[0].mxu0
    %652 = vmatprep.mubr.f32.mxu0 0.0
    %653 = vmatmul.mubr.f32.gmra.mrb[0].mxu0 %v581
    %v654 = vpop.f32.mrb[0].mxu0
    %v655 = vadd.f32 0.0, %v654
    %v656 = vpop.f32.mrb[0].mxu0
    %657 = vdwg.mxu0
    %658 = vrot.lane.b32.xlu0 %v236, 112
    %v659 = vpop.permute.xlu0 %658
    %660 = vrot.lane.b32.xlu0 %v241, 112
    %v661 = vpop.permute.xlu0 %660
    %662 = vrot.lane.b32.xlu0 %v236, 80
    %v663 = vpop.permute.xlu0 %662
    %664 = vrot.lane.b32.xlu0 %v241, 80
    %v665 = vpop.permute.xlu0 %664
    %v666 = vsel %vm260, %v659, 0
    %v668 = vsel %vm260, %v661, 0
    %v670 = vsel %vm260, %v663, 0
    %v672 = vsel %vm260, %v665, 0
    %674 = vmatprep.subr.mxu0 0.0
    %675 = vmatpush1.xpose.msra.mxu0 %v670
    %676 = vmatprep.subr.mxu0 0.0
    %677 = vmatpush1.xpose.msra.mxu0 %v672
    %678 = vmatprep.subr.mxu0 0.0
    %679 = vmatpush1.xpose.msra.mxu0 0.0
    %680 = vmatprep.subr.mxu0 0.0
    %681 = vmatpush1.xpose.msra.mxu0 0.0
    %682 = vmatprep.subr.mxu0 0.0
    %683 = vmatpush1.xpose.msra.mxu0 0.0
    %684 = vmatprep.subr.mxu0 0.0
    %685 = vmatpush1.xpose.msra.mxu0 0.0
    %686 = vmatprep.subr.mxu0 0.0
    %687 = vmatpush1.xpose.msra.mxu0 0.0
    %688 = vmatprep.subr.mxu0 0.0
    %689 = vmatpush1.xpose.msra.mxu0 0.0
    %690 = vmatprep.subr.mxu0 0.0
    %691 = vmatpush1.xpose.msra.mxu0 0.0
    %692 = vmatprep.subr.mxu0 0.0
    %693 = vmatpush1.xpose.msra.mxu0 0.0
    %694 = vmatprep.subr.mxu0 0.0
    %695 = vmatpush1.xpose.msra.mxu0 0.0
    %696 = vmatprep.subr.mxu0 0.0
    %697 = vmatpush1.xpose.msra.mxu0 0.0
    %698 = vmatprep.subr.mxu0 0.0
    %699 = vmatpush1.xpose.msra.mxu0 0.0
    %700 = vmatprep.subr.mxu0 0.0
    %701 = vmatpush1.xpose.msra.mxu0 0.0
    %702 = vmatprep.subr.mxu0 0.0
    %703 = vmatpush1.xpose.msra.mxu0 0.0
    %704 = vmatprep.subr.mxu0 0.0
    %705 = vmatpush1.xpose.msra.mxu0 0.0
    %706 = vmatprep.subr.mxu0 0.0
    %707 = vmatpush1.xpose.msra.mxu0 0.0
    %708 = vmatprep.subr.mxu0 0.0
    %709 = vmatpush1.xpose.msra.mxu0 0.0
    %710 = vmatprep.subr.mxu0 0.0
    %711 = vmatpush1.xpose.msra.mxu0 0.0
    %712 = vmatprep.subr.mxu0 0.0
    %713 = vmatpush1.xpose.msra.mxu0 0.0
    %714 = vmatprep.subr.mxu0 0.0
    %715 = vmatpush1.xpose.msra.mxu0 0.0
    %716 = vmatprep.subr.mxu0 0.0
    %717 = vmatpush1.xpose.msra.mxu0 0.0
    %718 = vmatprep.subr.mxu0 0.0
    %719 = vmatpush1.xpose.msra.mxu0 0.0
    %720 = vmatprep.subr.mxu0 0.0
    %721 = vmatpush1.xpose.msra.mxu0 0.0
    %722 = vmatprep.subr.mxu0 0.0
    %723 = vmatpush1.xpose.msra.mxu0 0.0
    %724 = vmatprep.subr.mxu0 0.0
    %725 = vmatpush1.xpose.msra.mxu0 0.0
    %726 = vmatprep.subr.mxu0 0.0
    %727 = vmatpush1.xpose.msra.mxu0 0.0
    %728 = vmatprep.subr.mxu0 0.0
    %729 = vmatpush1.xpose.msra.mxu0 0.0
    %730 = vmatprep.subr.mxu0 0.0
    %731 = vmatpush1.xpose.msra.mxu0 0.0
    %732 = vmatprep.subr.mxu0 0.0
    %733 = vmatpush1.xpose.msra.mxu0 0.0
    %734 = vmatprep.subr.mxu0 0.0
    %735 = vmatpush1.xpose.msra.mxu0 0.0
    %736 = vmatprep.subr.mxu0 0.0
    %737 = vmatpush1.xpose.msra.mxu0 0.0
    %738 = vmatprep.mubr.f32.mxu0 0.0
    %739 = vmatmul.mubr.f32.gmra.mrb[0].mxu0 %v666
    %v740 = vpop.f32.mrb[0].mxu0
    %v741 = vadd.f32 0.0, %v740
    %v742 = vpop.f32.mrb[0].mxu0
    %743 = vmatprep.mubr.f32.mxu0 0.0
    %744 = vmatmul.mubr.f32.gmra.mrb[0].mxu0 %v668
    %v745 = vpop.f32.mrb[0].mxu0
    %v746 = vadd.f32 0.0, %v745
    %v747 = vpop.f32.mrb[0].mxu0
    %748 = vdwg.mxu0
    %v749 = vmul.f32 %v741, 0.35355338
    %v750 = vmul.f32 %v746, 0.35355338
    %v751 = vsel %vm346, %v749, -inf
    %752 = vmax.xlane.f32.xlu0 %v751
    %v753 = vpop.xlane.xlu0 %752
    %v754 = vsel %vm346, %v750, -inf
    %755 = vmax.xlane.f32.xlu0 %v754
    %v756 = vpop.xlane.xlu0 %755
    %v757 = vsub.f32 %v749, %v753
    %v758 = vsub.f32 %v750, %v756
    %v759 = vmul.f32 %v757, 1.442695
    %v760 = vpow.pop %v759
    %v761 = vmul.f32 %v758, 1.442695
    %v762 = vpow.pop %v761
    %v763 = vsel %vm346, %v760, 0.0
    %764 = vadd.xlane.f32.xlu0 %v763
    %v765 = vpop.xlane.xlu0 %764
    %v766 = vsel %vm346, %v762, 0.0
    %767 = vadd.xlane.f32.xlu0 %v766
    %v768 = vpop.xlane.xlu0 %767
    %v769 = vrcp.pop %v765
    %v770 = vrcp.pop %v768
    %v771 = vmul.f32 %v760, %v769
    %v772 = vmul.f32 %v762, %v770
    %773 = vrot.lane.b32.xlu0 %v236, 48
    %v774 = vpop.permute.xlu0 %773
    %775 = vrot.lane.b32.xlu0 %v241, 48
    %v776 = vpop.permute.xlu0 %775
    %v780 = vsel %vm346, %v771, 0
    %v783 = vsel %vm346, %v772, 0
    %785 = vmatprep.subr.mxu0 0.0
    %786 = vmatpush1.msra.mxu0 %v774
    %787 = vmatprep.subr.mxu0 0.0
    %788 = vmatpush1.msra.mxu0 %v776
    %789 = vmatprep.subr.mxu0 0.0
    %790 = vmatpush1.msra.mxu0 0.0
    %791 = vmatprep.subr.mxu0 0.0
    %792 = vmatpush1.msra.mxu0 0.0
    %793 = vmatprep.subr.mxu0 0.0
    %794 = vmatpush1.msra.mxu0 0.0
    %795 = vmatprep.subr.mxu0 0.0
    %796 = vmatpush1.msra.mxu0 0.0
    %797 = vmatprep.subr.mxu0 0.0
    %798 = vmatpush1.msra.mxu0 0.0
    %799 = vmatprep.subr.mxu0 0.0
    %800 = vmatpush1.msra.mxu0 0.0
    %801 = vmatprep.subr.mxu0 0.0
    %802 = vmatpush1.msra.mxu0 0.0
    %803 = vmatprep.subr.mxu0 0.0
    %804 = vmatpush1.msra.mxu0 0.0
    %805 = vmatprep.subr.mxu0 0.0
    %806 = vmatpush1.msra.mxu0 0.0
    %807 = vmatprep.subr.mxu0 0.0
    %808 = vmatpush1.msra.mxu0 0.0
    %809 = vmatprep.subr.mxu0 0.0
    %810 = vmatpush1.msra.mxu0 0.0
    %811 = vmatprep.subr.mxu0 0.0
    %812 = vmatpush1.msra.mxu0 0.0
    %813 = vmatprep.subr.mxu0 0.0
    %814 = vmatpush1.msra.mxu0 0.0
    %815 = vmatprep.subr.mxu0 0.0
    %816 = vmatpush1.msra.mxu0 0.0
    %817 = vmatprep.subr.mxu0 0.0
    %818 = vmatpush1.msra.mxu0 0.0
    %819 = vmatprep.subr.mxu0 0.0
    %820 = vmatpush1.msra.mxu0 0.0
    %821 = vmatprep.subr.mxu0 0.0
    %822 = vmatpush1.msra.mxu0 0.0
    %823 = vmatprep.subr.mxu0 0.0
    %824 = vmatpush1.msra.mxu0 0.0
    %825 = vmatprep.subr.mxu0 0.0
    %826 = vmatpush1.msra.mxu0 0.0
    %827 = vmatprep.subr.mxu0 0.0
    %828 = vmatpush1.msra.mxu0 0.0
    %829 = vmatprep.subr.mxu0 0.0
    %830 = vmatpush1.msra.mxu0 0.0
    %831 = vmatprep.subr.mxu0 0.0
    %832 = vmatpush1.msra.mxu0 0.0
    %833 = vmatprep.subr.mxu0 0.0
    %834 = vmatpush1.msra.mxu0 0.0
    %835 = vmatprep.subr.mxu0 0.0
    %836 = vmatpush1.msra.mxu0 0.0
    %837 = vmatprep.subr.mxu0 0.0
    %838 = vmatpush1.msra.mxu0 0.0
    %839 = vmatprep.subr.mxu0 0.0
    %840 = vmatpush1.msra.mxu0 0.0
    %841 = vmatprep.subr.mxu0 0.0
    %842 = vmatpush1.msra.mxu0 0.0
    %843 = vmatprep.subr.mxu0 0.0
    %844 = vmatpush1.msra.mxu0 0.0
    %845 = vmatprep.subr.mxu0 0.0
    %846 = vmatpush1.msra.mxu0 0.0
    %847 = vmatprep.subr.mxu0 0.0
    %848 = vmatpush1.msra.mxu0 0.0
    %849 = vmatprep.mubr.f32.mxu0 0.0
    %850 = vmatmul.mubr.f32.gmra.mrb[0].mxu0 %v780
    %v851 = vpop.f32.mrb[0].mxu0
    %v852 = vadd.f32 0.0, %v851
    %v853 = vpop.f32.mrb[0].mxu0
    %854 = vmatprep.mubr.f32.mxu0 0.0
    %855 = vmatmul.mubr.f32.gmra.mrb[0].mxu0 %v783
    %v856 = vpop.f32.mrb[0].mxu0
    %v857 = vadd.f32 0.0, %v856
    %v858 = vpop.f32.mrb[0].mxu0
    %859 = vdwg.mxu0
    %860 = vrot.lane.b32.xlu0 %v236, 104
    %v861 = vpop.permute.xlu0 %860
    %862 = vrot.lane.b32.xlu0 %v241, 104
    %v863 = vpop.permute.xlu0 %862
    %864 = vrot.lane.b32.xlu0 %v236, 72
    %v865 = vpop.permute.xlu0 %864
    %866 = vrot.lane.b32.xlu0 %v241, 72
    %v867 = vpop.permute.xlu0 %866
    %v868 = vsel %vm260, %v861, 0
    %v870 = vsel %vm260, %v863, 0
    %v872 = vsel %vm260, %v865, 0
    %v874 = vsel %vm260, %v867, 0
    %876 = vmatprep.subr.mxu0 0.0
    %877 = vmatpush1.xpose.msra.mxu0 %v872
    %878 = vmatprep.subr.mxu0 0.0
    %879 = vmatpush1.xpose.msra.mxu0 %v874
    %880 = vmatprep.subr.mxu0 0.0
    %881 = vmatpush1.xpose.msra.mxu0 0.0
    %882 = vmatprep.subr.mxu0 0.0
    %883 = vmatpush1.xpose.msra.mxu0 0.0
    %884 = vmatprep.subr.mxu0 0.0
    %885 = vmatpush1.xpose.msra.mxu0 0.0
    %886 = vmatprep.subr.mxu0 0.0
    %887 = vmatpush1.xpose.msra.mxu0 0.0
    %888 = vmatprep.subr.mxu0 0.0
    %889 = vmatpush1.xpose.msra.mxu0 0.0
    %890 = vmatprep.subr.mxu0 0.0
    %891 = vmatpush1.xpose.msra.mxu0 0.0
    %892 = vmatprep.subr.mxu0 0.0
    %893 = vmatpush1.xpose.msra.mxu0 0.0
    %894 = vmatprep.subr.mxu0 0.0
    %895 = vmatpush1.xpose.msra.mxu0 0.0
    %896 = vmatprep.subr.mxu0 0.0
    %897 = vmatpush1.xpose.msra.mxu0 0.0
    %898 = vmatprep.subr.mxu0 0.0
    %899 = vmatpush1.xpose.msra.mxu0 0.0
    %900 = vmatprep.subr.mxu0 0.0
    %901 = vmatpush1.xpose.msra.mxu0 0.0
    %902 = vmatprep.subr.mxu0 0.0
    %903 = vmatpush1.xpose.msra.mxu0 0.0
    %904 = vmatprep.subr.mxu0 0.0
    %905 = vmatpush1.xpose.msra.mxu0 0.0
    %906 = vmatprep.subr.mxu0 0.0
    %907 = vmatpush1.xpose.msra.mxu0 0.0
    %908 = vmatprep.subr.mxu0 0.0
    %909 = vmatpush1.xpose.msra.mxu0 0.0
    %910 = vmatprep.subr.mxu0 0.0
    %911 = vmatpush1.xpose.msra.mxu0 0.0
    %912 = vmatprep.subr.mxu0 0.0
    %913 = vmatpush1.xpose.msra.mxu0 0.0
    %914 = vmatprep.subr.mxu0 0.0
    %915 = vmatpush1.xpose.msra.mxu0 0.0
    %916 = vmatprep.subr.mxu0 0.0
    %917 = vmatpush1.xpose.msra.mxu0 0.0
    %918 = vmatprep.subr.mxu0 0.0
    %919 = vmatpush1.xpose.msra.mxu0 0.0
    %920 = vmatprep.subr.mxu0 0.0
    %921 = vmatpush1.xpose.msra.mxu0 0.0
    %922 = vmatprep.subr.mxu0 0.0
    %923 = vmatpush1.xpose.msra.mxu0 0.0
    %924 = vmatprep.subr.mxu0 0.0
    %925 = vmatpush1.xpose.msra.mxu0 0.0
    %926 = vmatprep.subr.mxu0 0.0
    %927 = vmatpush1.xpose.msra.mxu0 0.0
    %928 = vmatprep.subr.mxu0 0.0
    %929 = vmatpush1.xpose.msra.mxu0 0.0
    %930 = vmatprep.subr.mxu0 0.0
    %931 = vmatpush1.xpose.msra.mxu0 0.0
    %932 = vmatprep.subr.mxu0 0.0
    %933 = vmatpush1.xpose.msra.mxu0 0.0
    %934 = vmatprep.subr.mxu0 0.0
    %935 = vmatpush1.xpose.msra.mxu0 0.0
    %936 = vmatprep.subr.mxu0 0.0
    %937 = vmatpush1.xpose.msra.mxu0 0.0
    %938 = vmatprep.subr.mxu0 0.0
    %939 = vmatpush1.xpose.msra.mxu0 0.0
    %940 = vmatprep.mubr.f32.mxu0 0.0
    %941 = vmatmul.mubr.f32.gmra.mrb[0].mxu0 %v868
    %v942 = vpop.f32.mrb[0].mxu0
    %v943 = vadd.f32 0.0, %v942
    %v944 = vpop.f32.mrb[0].mxu0
    %945 = vmatprep.mubr.f32.mxu0 0.0
    %946 = vmatmul.mubr.f32.gmra.mrb[0].mxu0 %v870
    %v947 = vpop.f32.mrb[0].mxu0
    %v948 = vadd.f32 0.0, %v947
    %v949 = vpop.f32.mrb[0].mxu0
    %950 = vdwg.mxu0
    %v951 = vmul.f32 %v943, 0.35355338
    %v952 = vmul.f32 %v948, 0.35355338
    %v953 = vsel %vm346, %v951, -inf
    %954 = vmax.xlane.f32.xlu0 %v953
    %v955 = vpop.xlane.xlu0 %954
    %v956 = vsel %vm346, %v952, -inf
    %957 = vmax.xlane.f32.xlu0 %v956
    %v958 = vpop.xlane.xlu0 %957
    %v959 = vsub.f32 %v951, %v955
    %v960 = vsub.f32 %v952, %v958
    %v961 = vmul.f32 %v959, 1.442695
    %v962 = vpow.pop %v961
    %v963 = vmul.f32 %v960, 1.442695
    %v964 = vpow.pop %v963
    %v965 = vsel %vm346, %v962, 0.0
    %966 = vadd.xlane.f32.xlu0 %v965
    %v967 = vpop.xlane.xlu0 %966
    %v968 = vsel %vm346, %v964, 0.0
    %969 = vadd.xlane.f32.xlu0 %v968
    %v970 = vpop.xlane.xlu0 %969
    %v971 = vrcp.pop %v967
    %v972 = vrcp.pop %v970
    %v973 = vmul.f32 %v962, %v971
    %v974 = vmul.f32 %v964, %v972
    %975 = vrot.lane.b32.xlu0 %v236, 40
    %v976 = vpop.permute.xlu0 %975
    %977 = vrot.lane.b32.xlu0 %v241, 40
    %v978 = vpop.permute.xlu0 %977
    %v982 = vsel %vm346, %v973, 0
    %v985 = vsel %vm346, %v974, 0
    %987 = vmatprep.subr.mxu0 0.0
    %988 = vmatpush1.msra.mxu0 %v976
    %989 = vmatprep.subr.mxu0 0.0
    %990 = vmatpush1.msra.mxu0 %v978
    %991 = vmatprep.subr.mxu0 0.0
    %992 = vmatpush1.msra.mxu0 0.0
    %993 = vmatprep.subr.mxu0 0.0
    %994 = vmatpush1.msra.mxu0 0.0
    %995 = vmatprep.subr.mxu0 0.0
    %996 = vmatpush1.msra.mxu0 0.0
    %997 = vmatprep.subr.mxu0 0.0
    %998 = vmatpush1.msra.mxu0 0.0
    %999 = vmatprep.subr.mxu0 0.0
    %1000 = vmatpush1.msra.mxu0 0.0
    %1001 = vmatprep.subr.mxu0 0.0
    %1002 = vmatpush1.msra.mxu0 0.0
    %1003 = vmatprep.subr.mxu0 0.0
    %1004 = vmatpush1.msra.mxu0 0.0
    %1005 = vmatprep.subr.mxu0 0.0
    %1006 = vmatpush1.msra.mxu0 0.0
    %1007 = vmatprep.subr.mxu0 0.0
    %1008 = vmatpush1.msra.mxu0 0.0
    %1009 = vmatprep.subr.mxu0 0.0
    %1010 = vmatpush1.msra.mxu0 0.0
    %1011 = vmatprep.subr.mxu0 0.0
    %1012 = vmatpush1.msra.mxu0 0.0
    %1013 = vmatprep.subr.mxu0 0.0
    %1014 = vmatpush1.msra.mxu0 0.0
    %1015 = vmatprep.subr.mxu0 0.0
    %1016 = vmatpush1.msra.mxu0 0.0
    %1017 = vmatprep.subr.mxu0 0.0
    %1018 = vmatpush1.msra.mxu0 0.0
    %1019 = vmatprep.subr.mxu0 0.0
    %1020 = vmatpush1.msra.mxu0 0.0
    %1021 = vmatprep.subr.mxu0 0.0
    %1022 = vmatpush1.msra.mxu0 0.0
    %1023 = vmatprep.subr.mxu0 0.0
    %1024 = vmatpush1.msra.mxu0 0.0
    %1025 = vmatprep.subr.mxu0 0.0
    %1026 = vmatpush1.msra.mxu0 0.0
    %1027 = vmatprep.subr.mxu0 0.0
    %1028 = vmatpush1.msra.mxu0 0.0
    %1029 = vmatprep.subr.mxu0 0.0
    %1030 = vmatpush1.msra.mxu0 0.0
    %1031 = vmatprep.subr.mxu0 0.0
    %1032 = vmatpush1.msra.mxu0 0.0
    %1033 = vmatprep.subr.mxu0 0.0
    %1034 = vmatpush1.msra.mxu0 0.0
    %1035 = vmatprep.subr.mxu0 0.0
    %1036 = vmatpush1.msra.mxu0 0.0
    %1037 = vmatprep.subr.mxu0 0.0
    %1038 = vmatpush1.msra.mxu0 0.0
    %1039 = vmatprep.subr.mxu0 0.0
    %1040 = vmatpush1.msra.mxu0 0.0
    %1041 = vmatprep.subr.mxu0 0.0
    %1042 = vmatpush1.msra.mxu0 0.0
    %1043 = vmatprep.subr.mxu0 0.0
    %1044 = vmatpush1.msra.mxu0 0.0
    %1045 = vmatprep.subr.mxu0 0.0
    %1046 = vmatpush1.msra.mxu0 0.0
    %1047 = vmatprep.subr.mxu0 0.0
    %1048 = vmatpush1.msra.mxu0 0.0
    %1049 = vmatprep.subr.mxu0 0.0
    %1050 = vmatpush1.msra.mxu0 0.0
    %1051 = vmatprep.mubr.f32.mxu0 0.0
    %1052 = vmatmul.mubr.f32.gmra.mrb[0].mxu0 %v982
    %v1053 = vpop.f32.mrb[0].mxu0
    %v1054 = vadd.f32 0.0, %v1053
    %v1055 = vpop.f32.mrb[0].mxu0
    %1056 = vmatprep.mubr.f32.mxu0 0.0
    %1057 = vmatmul.mubr.f32.gmra.mrb[0].mxu0 %v985
    %v1058 = vpop.f32.mrb[0].mxu0
    %v1059 = vadd.f32 0.0, %v1058
    %v1060 = vpop.f32.mrb[0].mxu0
    %1061 = vdwg.mxu0
    %1064 = vrot.lane.b32.xlu0 %v650, 8
    %v1065 = vpop.permute.xlu0 %1064
    %1066 = vrot.lane.b32.xlu0 %v655, 8
    %v1067 = vpop.permute.xlu0 %1066
    %1072 = vrot.lane.b32.xlu0 %v852, 16
    %v1073 = vpop.permute.xlu0 %1072
    %1074 = vrot.lane.b32.xlu0 %v857, 16
    %v1075 = vpop.permute.xlu0 %1074
    %1080 = vrot.lane.b32.xlu0 %v1054, 24
    %v1081 = vpop.permute.xlu0 %1080
    %1082 = vrot.lane.b32.xlu0 %v1059, 24
    %v1083 = vpop.permute.xlu0 %1082
    %v1086 = vsel %vm260, %v448, %v1065
    %v1087 = vsel %vm260, %v453, %v1067
    %v1088 = vsel %vm346, %v1086, %v1073
    %v1089 = vsel %vm346, %v1087, %v1075
    %vm1090 = vcmask 195584
    %v1091 = vsel %vm1090, %v1088, %v1081
    %v1092 = vsel %vm1090, %v1089, %v1083
    %1095 = vrot.lane.b32.xlu0 %v246, 96
    %v1096 = vpop.permute.xlu0 %1095
    %1097 = vrot.lane.b32.xlu0 %v251, 96
    %v1098 = vpop.permute.xlu0 %1097
    %v1099 = vsel %vm260, %v246, 0
    %v1101 = vsel %vm260, %v251, 0
    %v1103 = vsel %vm260, %v1096, 0
    %v1105 = vsel %vm260, %v1098, 0
    %1107 = vmatprep.subr.mxu0 0.0
    %1108 = vmatpush1.xpose.msra.mxu0 %v1103
    %1109 = vmatprep.subr.mxu0 0.0
    %1110 = vmatpush1.xpose.msra.mxu0 %v1105
    %1111 = vmatprep.subr.mxu0 0.0
    %1112 = vmatpush1.xpose.msra.mxu0 0.0
    %1113 = vmatprep.subr.mxu0 0.0
    %1114 = vmatpush1.xpose.msra.mxu0 0.0
    %1115 = vmatprep.subr.mxu0 0.0
    %1116 = vmatpush1.xpose.msra.mxu0 0.0
    %1117 = vmatprep.subr.mxu0 0.0
    %1118 = vmatpush1.xpose.msra.mxu0 0.0
    %1119 = vmatprep.subr.mxu0 0.0
    %1120 = vmatpush1.xpose.msra.mxu0 0.0
    %1121 = vmatprep.subr.mxu0 0.0
    %1122 = vmatpush1.xpose.msra.mxu0 0.0
    %1123 = vmatprep.subr.mxu0 0.0
    %1124 = vmatpush1.xpose.msra.mxu0 0.0
    %1125 = vmatprep.subr.mxu0 0.0
    %1126 = vmatpush1.xpose.msra.mxu0 0.0
    %1127 = vmatprep.subr.mxu0 0.0
    %1128 = vmatpush1.xpose.msra.mxu0 0.0
    %1129 = vmatprep.subr.mxu0 0.0
    %1130 = vmatpush1.xpose.msra.mxu0 0.0
    %1131 = vmatprep.subr.mxu0 0.0
    %1132 = vmatpush1.xpose.msra.mxu0 0.0
    %1133 = vmatprep.subr.mxu0 0.0
    %1134 = vmatpush1.xpose.msra.mxu0 0.0
    %1135 = vmatprep.subr.mxu0 0.0
    %1136 = vmatpush1.xpose.msra.mxu0 0.0
    %1137 = vmatprep.subr.mxu0 0.0
    %1138 = vmatpush1.xpose.msra.mxu0 0.0
    %1139 = vmatprep.subr.mxu0 0.0
    %1140 = vmatpush1.xpose.msra.mxu0 0.0
    %1141 = vmatprep.subr.mxu0 0.0
    %1142 = vmatpush1.xpose.msra.mxu0 0.0
    %1143 = vmatprep.subr.mxu0 0.0
    %1144 = vmatpush1.xpose.msra.mxu0 0.0
    %1145 = vmatprep.subr.mxu0 0.0
    %1146 = vmatpush1.xpose.msra.mxu0 0.0
    %1147 = vmatprep.subr.mxu0 0.0
    %1148 = vmatpush1.xpose.msra.mxu0 0.0
    %1149 = vmatprep.subr.mxu0 0.0
    %1150 = vmatpush1.xpose.msra.mxu0 0.0
    %1151 = vmatprep.subr.mxu0 0.0
    %1152 = vmatpush1.xpose.msra.mxu0 0.0
    %1153 = vmatprep.subr.mxu0 0.0
    %1154 = vmatpush1.xpose.msra.mxu0 0.0
    %1155 = vmatprep.subr.mxu0 0.0
    %1156 = vmatpush1.xpose.msra.mxu0 0.0
    %1157 = vmatprep.subr.mxu0 0.0
    %1158 = vmatpush1.xpose.msra.mxu0 0.0
    %1159 = vmatprep.subr.mxu0 0.0
    %1160 = vmatpush1.xpose.msra.mxu0 0.0
    %1161 = vmatprep.subr.mxu0 0.0
    %1162 = vmatpush1.xpose.msra.mxu0 0.0
    %1163 = vmatprep.subr.mxu0 0.0
    %1164 = vmatpush1.xpose.msra.mxu0 0.0
    %1165 = vmatprep.subr.mxu0 0.0
    %1166 = vmatpush1.xpose.msra.mxu0 0.0
    %1167 = vmatprep.subr.mxu0 0.0
    %1168 = vmatpush1.xpose.msra.mxu0 0.0
    %1169 = vmatprep.subr.mxu0 0.0
    %1170 = vmatpush1.xpose.msra.mxu0 0.0
    %1171 = vmatprep.mubr.f32.mxu0 0.0
    %1172 = vmatmul.mubr.f32.gmra.mrb[0].mxu0 %v1099
    %v1173 = vpop.f32.mrb[0].mxu0
    %v1174 = vadd.f32 0.0, %v1173
    %v1175 = vpop.f32.mrb[0].mxu0
    %1176 = vmatprep.mubr.f32.mxu0 0.0
    %1177 = vmatmul.mubr.f32.gmra.mrb[0].mxu0 %v1101
    %v1178 = vpop.f32.mrb[0].mxu0
    %v1179 = vadd.f32 0.0, %v1178
    %v1180 = vpop.f32.mrb[0].mxu0
    %1181 = vdwg.mxu0
    %v1182 = vmul.f32 %v1174, 0.35355338
    %v1183 = vmul.f32 %v1179, 0.35355338
    %v1184 = vsel %vm346, %v1182, -inf
    %1185 = vmax.xlane.f32.xlu0 %v1184
    %v1186 = vpop.xlane.xlu0 %1185
    %v1187 = vsel %vm346, %v1183, -inf
    %1188 = vmax.xlane.f32.xlu0 %v1187
    %v1189 = vpop.xlane.xlu0 %1188
    %v1190 = vsub.f32 %v1182, %v1186
    %v1191 = vsub.f32 %v1183, %v1189
    %v1192 = vmul.f32 %v1190, 1.442695
    %v1193 = vpow.pop %v1192
    %v1194 = vmul.f32 %v1191, 1.442695
    %v1195 = vpow.pop %v1194
    %v1196 = vsel %vm346, %v1193, 0.0
    %1197 = vadd.xlane.f32.xlu0 %v1196
    %v1198 = vpop.xlane.xlu0 %1197
    %v1199 = vsel %vm346, %v1195, 0.0
    %1200 = vadd.xlane.f32.xlu0 %v1199
    %v1201 = vpop.xlane.xlu0 %1200
    %v1202 = vrcp.pop %v1198
    %v1203 = vrcp.pop %v1201
    %v1204 = vmul.f32 %v1193, %v1202
    %v1205 = vmul.f32 %v1195, %v1203
    %1206 = vrot.lane.b32.xlu0 %v246, 64
    %v1207 = vpop.permute.xlu0 %1206
    %1208 = vrot.lane.b32.xlu0 %v251, 64
    %v1209 = vpop.permute.xlu0 %1208
    %v1213 = vsel %vm346, %v1204, 0
    %v1216 = vsel %vm346, %v1205, 0
    %1218 = vmatprep.subr.mxu0 0.0
    %1219 = vmatpush1.msra.mxu0 %v1207
    %1220 = vmatprep.subr.mxu0 0.0
    %1221 = vmatpush1.msra.mxu0 %v1209
    %1222 = vmatprep.subr.mxu0 0.0
    %1223 = vmatpush1.msra.mxu0 0.0
    %1224 = vmatprep.subr.mxu0 0.0
    %1225 = vmatpush1.msra.mxu0 0.0
    %1226 = vmatprep.subr.mxu0 0.0
    %1227 = vmatpush1.msra.mxu0 0.0
    %1228 = vmatprep.subr.mxu0 0.0
    %1229 = vmatpush1.msra.mxu0 0.0
    %1230 = vmatprep.subr.mxu0 0.0
    %1231 = vmatpush1.msra.mxu0 0.0
    %1232 = vmatprep.subr.mxu0 0.0
    %1233 = vmatpush1.msra.mxu0 0.0
    %1234 = vmatprep.subr.mxu0 0.0
    %1235 = vmatpush1.msra.mxu0 0.0
    %1236 = vmatprep.subr.mxu0 0.0
    %1237 = vmatpush1.msra.mxu0 0.0
    %1238 = vmatprep.subr.mxu0 0.0
    %1239 = vmatpush1.msra.mxu0 0.0
    %1240 = vmatprep.subr.mxu0 0.0
    %1241 = vmatpush1.msra.mxu0 0.0
    %1242 = vmatprep.subr.mxu0 0.0
    %1243 = vmatpush1.msra.mxu0 0.0
    %1244 = vmatprep.subr.mxu0 0.0
    %1245 = vmatpush1.msra.mxu0 0.0
    %1246 = vmatprep.subr.mxu0 0.0
    %1247 = vmatpush1.msra.mxu0 0.0
    %1248 = vmatprep.subr.mxu0 0.0
    %1249 = vmatpush1.msra.mxu0 0.0
    %1250 = vmatprep.subr.mxu0 0.0
    %1251 = vmatpush1.msra.mxu0 0.0
    %1252 = vmatprep.subr.mxu0 0.0
    %1253 = vmatpush1.msra.mxu0 0.0
    %1254 = vmatprep.subr.mxu0 0.0
    %1255 = vmatpush1.msra.mxu0 0.0
    %1256 = vmatprep.subr.mxu0 0.0
    %1257 = vmatpush1.msra.mxu0 0.0
    %1258 = vmatprep.subr.mxu0 0.0
    %1259 = vmatpush1.msra.mxu0 0.0
    %1260 = vmatprep.subr.mxu0 0.0
    %1261 = vmatpush1.msra.mxu0 0.0
    %1262 = vmatprep.subr.mxu0 0.0
    %1263 = vmatpush1.msra.mxu0 0.0
    %1264 = vmatprep.subr.mxu0 0.0
    %1265 = vmatpush1.msra.mxu0 0.0
    %1266 = vmatprep.subr.mxu0 0.0
    %1267 = vmatpush1.msra.mxu0 0.0
    %1268 = vmatprep.subr.mxu0 0.0
    %1269 = vmatpush1.msra.mxu0 0.0
    %1270 = vmatprep.subr.mxu0 0.0
    %1271 = vmatpush1.msra.mxu0 0.0
    %1272 = vmatprep.subr.mxu0 0.0
    %1273 = vmatpush1.msra.mxu0 0.0
    %1274 = vmatprep.subr.mxu0 0.0
    %1275 = vmatpush1.msra.mxu0 0.0
    %1276 = vmatprep.subr.mxu0 0.0
    %1277 = vmatpush1.msra.mxu0 0.0
    %1278 = vmatprep.subr.mxu0 0.0
    %1279 = vmatpush1.msra.mxu0 0.0
    %1280 = vmatprep.subr.mxu0 0.0
    %1281 = vmatpush1.msra.mxu0 0.0
    %1282 = vmatprep.mubr.f32.mxu0 0.0
    %1283 = vmatmul.mubr.f32.gmra.mrb[0].mxu0 %v1213
    %v1284 = vpop.f32.mrb[0].mxu0
    %v1285 = vadd.f32 0.0, %v1284
    %v1286 = vpop.f32.mrb[0].mxu0
    %1287 = vmatprep.mubr.f32.mxu0 0.0
    %1288 = vmatmul.mubr.f32.gmra.mrb[0].mxu0 %v1216
    %v1289 = vpop.f32.mrb[0].mxu0
    %v1290 = vadd.f32 0.0, %v1289
    %v1291 = vpop.f32.mrb[0].mxu0
    %1292 = vdwg.mxu0
    %1293 = vrot.lane.b32.xlu0 %v246, 120
    %v1294 = vpop.permute.xlu0 %1293
    %1295 = vrot.lane.b32.xlu0 %v251, 120
    %v1296 = vpop.permute.xlu0 %1295
    %1297 = vrot.lane.b32.xlu0 %v246, 88
    %v1298 = vpop.permute.xlu0 %1297
    %1299 = vrot.lane.b32.xlu0 %v251, 88
    %v1300 = vpop.permute.xlu0 %1299
    %v1301 = vsel %vm260, %v1294, 0
    %v1303 = vsel %vm260, %v1296, 0
    %v1305 = vsel %vm260, %v1298, 0
    %v1307 = vsel %vm260, %v1300, 0
    %1309 = vmatprep.subr.mxu0 0.0
    %1310 = vmatpush1.xpose.msra.mxu0 %v1305
    %1311 = vmatprep.subr.mxu0 0.0
    %1312 = vmatpush1.xpose.msra.mxu0 %v1307
    %1313 = vmatprep.subr.mxu0 0.0
    %1314 = vmatpush1.xpose.msra.mxu0 0.0
    %1315 = vmatprep.subr.mxu0 0.0
    %1316 = vmatpush1.xpose.msra.mxu0 0.0
    %1317 = vmatprep.subr.mxu0 0.0
    %1318 = vmatpush1.xpose.msra.mxu0 0.0
    %1319 = vmatprep.subr.mxu0 0.0
    %1320 = vmatpush1.xpose.msra.mxu0 0.0
    %1321 = vmatprep.subr.mxu0 0.0
    %1322 = vmatpush1.xpose.msra.mxu0 0.0
    %1323 = vmatprep.subr.mxu0 0.0
    %1324 = vmatpush1.xpose.msra.mxu0 0.0
    %1325 = vmatprep.subr.mxu0 0.0
    %1326 = vmatpush1.xpose.msra.mxu0 0.0
    %1327 = vmatprep.subr.mxu0 0.0
    %1328 = vmatpush1.xpose.msra.mxu0 0.0
    %1329 = vmatprep.subr.mxu0 0.0
    %1330 = vmatpush1.xpose.msra.mxu0 0.0
    %1331 = vmatprep.subr.mxu0 0.0
    %1332 = vmatpush1.xpose.msra.mxu0 0.0
    %1333 = vmatprep.subr.mxu0 0.0
    %1334 = vmatpush1.xpose.msra.mxu0 0.0
    %1335 = vmatprep.subr.mxu0 0.0
    %1336 = vmatpush1.xpose.msra.mxu0 0.0
    %1337 = vmatprep.subr.mxu0 0.0
    %1338 = vmatpush1.xpose.msra.mxu0 0.0
    %1339 = vmatprep.subr.mxu0 0.0
    %1340 = vmatpush1.xpose.msra.mxu0 0.0
    %1341 = vmatprep.subr.mxu0 0.0
    %1342 = vmatpush1.xpose.msra.mxu0 0.0
    %1343 = vmatprep.subr.mxu0 0.0
    %1344 = vmatpush1.xpose.msra.mxu0 0.0
    %1345 = vmatprep.subr.mxu0 0.0
    %1346 = vmatpush1.xpose.msra.mxu0 0.0
    %1347 = vmatprep.subr.mxu0 0.0
    %1348 = vmatpush1.xpose.msra.mxu0 0.0
    %1349 = vmatprep.subr.mxu0 0.0
    %1350 = vmatpush1.xpose.msra.mxu0 0.0
    %1351 = vmatprep.subr.mxu0 0.0
    %1352 = vmatpush1.xpose.msra.mxu0 0.0
    %1353 = vmatprep.subr.mxu0 0.0
    %1354 = vmatpush1.xpose.msra.mxu0 0.0
    %1355 = vmatprep.subr.mxu0 0.0
    %1356 = vmatpush1.xpose.msra.mxu0 0.0
    %1357 = vmatprep.subr.mxu0 0.0
    %1358 = vmatpush1.xpose.msra.mxu0 0.0
    %1359 = vmatprep.subr.mxu0 0.0
    %1360 = vmatpush1.xpose.msra.mxu0 0.0
    %1361 = vmatprep.subr.mxu0 0.0
    %1362 = vmatpush1.xpose.msra.mxu0 0.0
    %1363 = vmatprep.subr.mxu0 0.0
    %1364 = vmatpush1.xpose.msra.mxu0 0.0
    %1365 = vmatprep.subr.mxu0 0.0
    %1366 = vmatpush1.xpose.msra.mxu0 0.0
    %1367 = vmatprep.subr.mxu0 0.0
    %1368 = vmatpush1.xpose.msra.mxu0 0.0
    %1369 = vmatprep.subr.mxu0 0.0
    %1370 = vmatpush1.xpose.msra.mxu0 0.0
    %1371 = vmatprep.subr.mxu0 0.0
    %1372 = vmatpush1.xpose.msra.mxu0 0.0
    %1373 = vmatprep.mubr.f32.mxu0 0.0
    %1374 = vmatmul.mubr.f32.gmra.mrb[0].mxu0 %v1301
    %v1375 = vpop.f32.mrb[0].mxu0
    %v1376 = vadd.f32 0.0, %v1375
    %v1377 = vpop.f32.mrb[0].mxu0
    %1378 = vmatprep.mubr.f32.mxu0 0.0
    %1379 = vmatmul.mubr.f32.gmra.mrb[0].mxu0 %v1303
    %v1380 = vpop.f32.mrb[0].mxu0
    %v1381 = vadd.f32 0.0, %v1380
    %v1382 = vpop.f32.mrb[0].mxu0
    %1383 = vdwg.mxu0
    %v1384 = vmul.f32 %v1376, 0.35355338
    %v1385 = vmul.f32 %v1381, 0.35355338
    %v1386 = vsel %vm346, %v1384, -inf
    %1387 = vmax.xlane.f32.xlu0 %v1386
    %v1388 = vpop.xlane.xlu0 %1387
    %v1389 = vsel %vm346, %v1385, -inf
    %1390 = vmax.xlane.f32.xlu0 %v1389
    %v1391 = vpop.xlane.xlu0 %1390
    %v1392 = vsub.f32 %v1384, %v1388
    %v1393 = vsub.f32 %v1385, %v1391
    %v1394 = vmul.f32 %v1392, 1.442695
    %v1395 = vpow.pop %v1394
    %v1396 = vmul.f32 %v1393, 1.442695
    %v1397 = vpow.pop %v1396
    %v1398 = vsel %vm346, %v1395, 0.0
    %1399 = vadd.xlane.f32.xlu0 %v1398
    %v1400 = vpop.xlane.xlu0 %1399
    %v1401 = vsel %vm346, %v1397, 0.0
    %1402 = vadd.xlane.f32.xlu0 %v1401
    %v1403 = vpop.xlane.xlu0 %1402
    %v1404 = vrcp.pop %v1400
    %v1405 = vrcp.pop %v1403
    %v1406 = vmul.f32 %v1395, %v1404
    %v1407 = vmul.f32 %v1397, %v1405
    %1408 = vrot.lane.b32.xlu0 %v246, 56
    %v1409 = vpop.permute.xlu0 %1408
    %1410 = vrot.lane.b32.xlu0 %v251, 56
    %v1411 = vpop.permute.xlu0 %1410
    %v1415 = vsel %vm346, %v1406, 0
    %v1418 = vsel %vm346, %v1407, 0
    %1420 = vmatprep.subr.mxu0 0.0
    %1421 = vmatpush1.msra.mxu0 %v1409
    %1422 = vmatprep.subr.mxu0 0.0
    %1423 = vmatpush1.msra.mxu0 %v1411
    %1424 = vmatprep.subr.mxu0 0.0
    %1425 = vmatpush1.msra.mxu0 0.0
    %1426 = vmatprep.subr.mxu0 0.0
    %1427 = vmatpush1.msra.mxu0 0.0
    %1428 = vmatprep.subr.mxu0 0.0
    %1429 = vmatpush1.msra.mxu0 0.0
    %1430 = vmatprep.subr.mxu0 0.0
    %1431 = vmatpush1.msra.mxu0 0.0
    %1432 = vmatprep.subr.mxu0 0.0
    %1433 = vmatpush1.msra.mxu0 0.0
    %1434 = vmatprep.subr.mxu0 0.0
    %1435 = vmatpush1.msra.mxu0 0.0
    %1436 = vmatprep.subr.mxu0 0.0
    %1437 = vmatpush1.msra.mxu0 0.0
    %1438 = vmatprep.subr.mxu0 0.0
    %1439 = vmatpush1.msra.mxu0 0.0
    %1440 = vmatprep.subr.mxu0 0.0
    %1441 = vmatpush1.msra.mxu0 0.0
    %1442 = vmatprep.subr.mxu0 0.0
    %1443 = vmatpush1.msra.mxu0 0.0
    %1444 = vmatprep.subr.mxu0 0.0
    %1445 = vmatpush1.msra.mxu0 0.0
    %1446 = vmatprep.subr.mxu0 0.0
    %1447 = vmatpush1.msra.mxu0 0.0
    %1448 = vmatprep.subr.mxu0 0.0
    %1449 = vmatpush1.msra.mxu0 0.0
    %1450 = vmatprep.subr.mxu0 0.0
    %1451 = vmatpush1.msra.mxu0 0.0
    %1452 = vmatprep.subr.mxu0 0.0
    %1453 = vmatpush1.msra.mxu0 0.0
    %1454 = vmatprep.subr.mxu0 0.0
    %1455 = vmatpush1.msra.mxu0 0.0
    %1456 = vmatprep.subr.mxu0 0.0
    %1457 = vmatpush1.msra.mxu0 0.0
    %1458 = vmatprep.subr.mxu0 0.0
    %1459 = vmatpush1.msra.mxu0 0.0
    %1460 = vmatprep.subr.mxu0 0.0
    %1461 = vmatpush1.msra.mxu0 0.0
    %1462 = vmatprep.subr.mxu0 0.0
    %1463 = vmatpush1.msra.mxu0 0.0
    %1464 = vmatprep.subr.mxu0 0.0
    %1465 = vmatpush1.msra.mxu0 0.0
    %1466 = vmatprep.subr.mxu0 0.0
    %1467 = vmatpush1.msra.mxu0 0.0
    %1468 = vmatprep.subr.mxu0 0.0
    %1469 = vmatpush1.msra.mxu0 0.0
    %1470 = vmatprep.subr.mxu0 0.0
    %1471 = vmatpush1.msra.mxu0 0.0
    %1472 = vmatprep.subr.mxu0 0.0
    %1473 = vmatpush1.msra.mxu0 0.0
    %1474 = vmatprep.subr.mxu0 0.0
    %1475 = vmatpush1.msra.mxu0 0.0
    %1476 = vmatprep.subr.mxu0 0.0
    %1477 = vmatpush1.msra.mxu0 0.0
    %1478 = vmatprep.subr.mxu0 0.0
    %1479 = vmatpush1.msra.mxu0 0.0
    %1480 = vmatprep.subr.mxu0 0.0
    %1481 = vmatpush1.msra.mxu0 0.0
    %1482 = vmatprep.subr.mxu0 0.0
    %1483 = vmatpush1.msra.mxu0 0.0
    %1484 = vmatprep.mubr.f32.mxu0 0.0
    %1485 = vmatmul.mubr.f32.gmra.mrb[0].mxu0 %v1415
    %v1486 = vpop.f32.mrb[0].mxu0
    %v1487 = vadd.f32 0.0, %v1486
    %v1488 = vpop.f32.mrb[0].mxu0
    %1489 = vmatprep.mubr.f32.mxu0 0.0
    %1490 = vmatmul.mubr.f32.gmra.mrb[0].mxu0 %v1418
    %v1491 = vpop.f32.mrb[0].mxu0
    %v1492 = vadd.f32 0.0, %v1491
    %v1493 = vpop.f32.mrb[0].mxu0
    %1494 = vdwg.mxu0
    %1495 = vrot.lane.b32.xlu0 %v246, 112
    %v1496 = vpop.permute.xlu0 %1495
    %1497 = vrot.lane.b32.xlu0 %v251, 112
    %v1498 = vpop.permute.xlu0 %1497
    %1499 = vrot.lane.b32.xlu0 %v246, 80
    %v1500 = vpop.permute.xlu0 %1499
    %1501 = vrot.lane.b32.xlu0 %v251, 80
    %v1502 = vpop.permute.xlu0 %1501
    %v1503 = vsel %vm260, %v1496, 0
    %v1505 = vsel %vm260, %v1498, 0
    %v1507 = vsel %vm260, %v1500, 0
    %v1509 = vsel %vm260, %v1502, 0
    %1511 = vmatprep.subr.mxu0 0.0
    %1512 = vmatpush1.xpose.msra.mxu0 %v1507
    %1513 = vmatprep.subr.mxu0 0.0
    %1514 = vmatpush1.xpose.msra.mxu0 %v1509
    %1515 = vmatprep.subr.mxu0 0.0
    %1516 = vmatpush1.xpose.msra.mxu0 0.0
    %1517 = vmatprep.subr.mxu0 0.0
    %1518 = vmatpush1.xpose.msra.mxu0 0.0
    %1519 = vmatprep.subr.mxu0 0.0
    %1520 = vmatpush1.xpose.msra.mxu0 0.0
    %1521 = vmatprep.subr.mxu0 0.0
    %1522 = vmatpush1.xpose.msra.mxu0 0.0
    %1523 = vmatprep.subr.mxu0 0.0
    %1524 = vmatpush1.xpose.msra.mxu0 0.0
    %1525 = vmatprep.subr.mxu0 0.0
    %1526 = vmatpush1.xpose.msra.mxu0 0.0
    %1527 = vmatprep.subr.mxu0 0.0
    %1528 = vmatpush1.xpose.msra.mxu0 0.0
    %1529 = vmatprep.subr.mxu0 0.0
    %1530 = vmatpush1.xpose.msra.mxu0 0.0
    %1531 = vmatprep.subr.mxu0 0.0
    %1532 = vmatpush1.xpose.msra.mxu0 0.0
    %1533 = vmatprep.subr.mxu0 0.0
    %1534 = vmatpush1.xpose.msra.mxu0 0.0
    %1535 = vmatprep.subr.mxu0 0.0
    %1536 = vmatpush1.xpose.msra.mxu0 0.0
    %1537 = vmatprep.subr.mxu0 0.0
    %1538 = vmatpush1.xpose.msra.mxu0 0.0
    %1539 = vmatprep.subr.mxu0 0.0
    %1540 = vmatpush1.xpose.msra.mxu0 0.0
    %1541 = vmatprep.subr.mxu0 0.0
    %1542 = vmatpush1.xpose.msra.mxu0 0.0
    %1543 = vmatprep.subr.mxu0 0.0
    %1544 = vmatpush1.xpose.msra.mxu0 0.0
    %1545 = vmatprep.subr.mxu0 0.0
    %1546 = vmatpush1.xpose.msra.mxu0 0.0
    %1547 = vmatprep.subr.mxu0 0.0
    %1548 = vmatpush1.xpose.msra.mxu0 0.0
    %1549 = vmatprep.subr.mxu0 0.0
    %1550 = vmatpush1.xpose.msra.mxu0 0.0
    %1551 = vmatprep.subr.mxu0 0.0
    %1552 = vmatpush1.xpose.msra.mxu0 0.0
    %1553 = vmatprep.subr.mxu0 0.0
    %1554 = vmatpush1.xpose.msra.mxu0 0.0
    %1555 = vmatprep.subr.mxu0 0.0
    %1556 = vmatpush1.xpose.msra.mxu0 0.0
    %1557 = vmatprep.subr.mxu0 0.0
    %1558 = vmatpush1.xpose.msra.mxu0 0.0
    %1559 = vmatprep.subr.mxu0 0.0
    %1560 = vmatpush1.xpose.msra.mxu0 0.0
    %1561 = vmatprep.subr.mxu0 0.0
    %1562 = vmatpush1.xpose.msra.mxu0 0.0
    %1563 = vmatprep.subr.mxu0 0.0
    %1564 = vmatpush1.xpose.msra.mxu0 0.0
    %1565 = vmatprep.subr.mxu0 0.0
    %1566 = vmatpush1.xpose.msra.mxu0 0.0
    %1567 = vmatprep.subr.mxu0 0.0
    %1568 = vmatpush1.xpose.msra.mxu0 0.0
    %1569 = vmatprep.subr.mxu0 0.0
    %1570 = vmatpush1.xpose.msra.mxu0 0.0
    %1571 = vmatprep.subr.mxu0 0.0
    %1572 = vmatpush1.xpose.msra.mxu0 0.0
    %1573 = vmatprep.subr.mxu0 0.0
    %1574 = vmatpush1.xpose.msra.mxu0 0.0
    %1575 = vmatprep.mubr.f32.mxu0 0.0
    %1576 = vmatmul.mubr.f32.gmra.mrb[0].mxu0 %v1503
    %v1577 = vpop.f32.mrb[0].mxu0
    %v1578 = vadd.f32 0.0, %v1577
    %v1579 = vpop.f32.mrb[0].mxu0
    %1580 = vmatprep.mubr.f32.mxu0 0.0
    %1581 = vmatmul.mubr.f32.gmra.mrb[0].mxu0 %v1505
    %v1582 = vpop.f32.mrb[0].mxu0
    %v1583 = vadd.f32 0.0, %v1582
    %v1584 = vpop.f32.mrb[0].mxu0
    %1585 = vdwg.mxu0
    %v1586 = vmul.f32 %v1578, 0.35355338
    %v1587 = vmul.f32 %v1583, 0.35355338
    %v1588 = vsel %vm346, %v1586, -inf
    %1589 = vmax.xlane.f32.xlu0 %v1588
    %v1590 = vpop.xlane.xlu0 %1589
    %v1591 = vsel %vm346, %v1587, -inf
    %1592 = vmax.xlane.f32.xlu0 %v1591
    %v1593 = vpop.xlane.xlu0 %1592
    %v1594 = vsub.f32 %v1586, %v1590
    %v1595 = vsub.f32 %v1587, %v1593
    %v1596 = vmul.f32 %v1594, 1.442695
    %v1597 = vpow.pop %v1596
    %v1598 = vmul.f32 %v1595, 1.442695
    %v1599 = vpow.pop %v1598
    %v1600 = vsel %vm346, %v1597, 0.0
    %1601 = vadd.xlane.f32.xlu0 %v1600
    %v1602 = vpop.xlane.xlu0 %1601
    %v1603 = vsel %vm346, %v1599, 0.0
    %1604 = vadd.xlane.f32.xlu0 %v1603
    %v1605 = vpop.xlane.xlu0 %1604
    %v1606 = vrcp.pop %v1602
    %v1607 = vrcp.pop %v1605
    %v1608 = vmul.f32 %v1597, %v1606
    %v1609 = vmul.f32 %v1599, %v1607
    %1610 = vrot.lane.b32.xlu0 %v246, 48
    %v1611 = vpop.permute.xlu0 %1610
    %1612 = vrot.lane.b32.xlu0 %v251, 48
    %v1613 = vpop.permute.xlu0 %1612
    %v1617 = vsel %vm346, %v1608, 0
    %v1620 = vsel %vm346, %v1609, 0
    %1622 = vmatprep.subr.mxu0 0.0
    %1623 = vmatpush1.msra.mxu0 %v1611
    %1624 = vmatprep.subr.mxu0 0.0
    %1625 = vmatpush1.msra.mxu0 %v1613
    %1626 = vmatprep.subr.mxu0 0.0
    %1627 = vmatpush1.msra.mxu0 0.0
    %1628 = vmatprep.subr.mxu0 0.0
    %1629 = vmatpush1.msra.mxu0 0.0
    %1630 = vmatprep.subr.mxu0 0.0
    %1631 = vmatpush1.msra.mxu0 0.0
    %1632 = vmatprep.subr.mxu0 0.0
    %1633 = vmatpush1.msra.mxu0 0.0
    %1634 = vmatprep.subr.mxu0 0.0
    %1635 = vmatpush1.msra.mxu0 0.0
    %1636 = vmatprep.subr.mxu0 0.0
    %1637 = vmatpush1.msra.mxu0 0.0
    %1638 = vmatprep.subr.mxu0 0.0
    %1639 = vmatpush1.msra.mxu0 0.0
    %1640 = vmatprep.subr.mxu0 0.0
    %1641 = vmatpush1.msra.mxu0 0.0
    %1642 = vmatprep.subr.mxu0 0.0
    %1643 = vmatpush1.msra.mxu0 0.0
    %1644 = vmatprep.subr.mxu0 0.0
    %1645 = vmatpush1.msra.mxu0 0.0
    %1646 = vmatprep.subr.mxu0 0.0
    %1647 = vmatpush1.msra.mxu0 0.0
    %1648 = vmatprep.subr.mxu0 0.0
    %1649 = vmatpush1.msra.mxu0 0.0
    %1650 = vmatprep.subr.mxu0 0.0
    %1651 = vmatpush1.msra.mxu0 0.0
    %1652 = vmatprep.subr.mxu0 0.0
    %1653 = vmatpush1.msra.mxu0 0.0
    %1654 = vmatprep.subr.mxu0 0.0
    %1655 = vmatpush1.msra.mxu0 0.0
    %1656 = vmatprep.subr.mxu0 0.0
    %1657 = vmatpush1.msra.mxu0 0.0
    %1658 = vmatprep.subr.mxu0 0.0
    %1659 = vmatpush1.msra.mxu0 0.0
    %1660 = vmatprep.subr.mxu0 0.0
    %1661 = vmatpush1.msra.mxu0 0.0
    %1662 = vmatprep.subr.mxu0 0.0
    %1663 = vmatpush1.msra.mxu0 0.0
    %1664 = vmatprep.subr.mxu0 0.0
    %1665 = vmatpush1.msra.mxu0 0.0
    %1666 = vmatprep.subr.mxu0 0.0
    %1667 = vmatpush1.msra.mxu0 0.0
    %1668 = vmatprep.subr.mxu0 0.0
    %1669 = vmatpush1.msra.mxu0 0.0
    %1670 = vmatprep.subr.mxu0 0.0
    %1671 = vmatpush1.msra.mxu0 0.0
    %1672 = vmatprep.subr.mxu0 0.0
    %1673 = vmatpush1.msra.mxu0 0.0
    %1674 = vmatprep.subr.mxu0 0.0
    %1675 = vmatpush1.msra.mxu0 0.0
    %1676 = vmatprep.subr.mxu0 0.0
    %1677 = vmatpush1.msra.mxu0 0.0
    %1678 = vmatprep.subr.mxu0 0.0
    %1679 = vmatpush1.msra.mxu0 0.0
    %1680 = vmatprep.subr.mxu0 0.0
    %1681 = vmatpush1.msra.mxu0 0.0
    %1682 = vmatprep.subr.mxu0 0.0
    %1683 = vmatpush1.msra.mxu0 0.0
    %1684 = vmatprep.subr.mxu0 0.0
    %1685 = vmatpush1.msra.mxu0 0.0
    %1686 = vmatprep.mubr.f32.mxu0 0.0
    %1687 = vmatmul.mubr.f32.gmra.mrb[0].mxu0 %v1617
    %v1688 = vpop.f32.mrb[0].mxu0
    %v1689 = vadd.f32 0.0, %v1688
    %v1690 = vpop.f32.mrb[0].mxu0
    %1691 = vmatprep.mubr.f32.mxu0 0.0
    %1692 = vmatmul.mubr.f32.gmra.mrb[0].mxu0 %v1620
    %v1693 = vpop.f32.mrb[0].mxu0
    %v1694 = vadd.f32 0.0, %v1693
    %v1695 = vpop.f32.mrb[0].mxu0
    %1696 = vdwg.mxu0
    %1697 = vrot.lane.b32.xlu0 %v246, 104
    %v1698 = vpop.permute.xlu0 %1697
    %1699 = vrot.lane.b32.xlu0 %v251, 104
    %v1700 = vpop.permute.xlu0 %1699
    %1701 = vrot.lane.b32.xlu0 %v246, 72
    %v1702 = vpop.permute.xlu0 %1701
    %1703 = vrot.lane.b32.xlu0 %v251, 72
    %v1704 = vpop.permute.xlu0 %1703
    %v1705 = vsel %vm260, %v1698, 0
    %v1707 = vsel %vm260, %v1700, 0
    %v1709 = vsel %vm260, %v1702, 0
    %v1711 = vsel %vm260, %v1704, 0
    %1713 = vmatprep.subr.mxu0 0.0
    %1714 = vmatpush1.xpose.msra.mxu0 %v1709
    %1715 = vmatprep.subr.mxu0 0.0
    %1716 = vmatpush1.xpose.msra.mxu0 %v1711
    %1717 = vmatprep.subr.mxu0 0.0
    %1718 = vmatpush1.xpose.msra.mxu0 0.0
    %1719 = vmatprep.subr.mxu0 0.0
    %1720 = vmatpush1.xpose.msra.mxu0 0.0
    %1721 = vmatprep.subr.mxu0 0.0
    %1722 = vmatpush1.xpose.msra.mxu0 0.0
    %1723 = vmatprep.subr.mxu0 0.0
    %1724 = vmatpush1.xpose.msra.mxu0 0.0
    %1725 = vmatprep.subr.mxu0 0.0
    %1726 = vmatpush1.xpose.msra.mxu0 0.0
    %1727 = vmatprep.subr.mxu0 0.0
    %1728 = vmatpush1.xpose.msra.mxu0 0.0
    %1729 = vmatprep.subr.mxu0 0.0
    %1730 = vmatpush1.xpose.msra.mxu0 0.0
    %1731 = vmatprep.subr.mxu0 0.0
    %1732 = vmatpush1.xpose.msra.mxu0 0.0
    %1733 = vmatprep.subr.mxu0 0.0
    %1734 = vmatpush1.xpose.msra.mxu0 0.0
    %1735 = vmatprep.subr.mxu0 0.0
    %1736 = vmatpush1.xpose.msra.mxu0 0.0
    %1737 = vmatprep.subr.mxu0 0.0
    %1738 = vmatpush1.xpose.msra.mxu0 0.0
    %1739 = vmatprep.subr.mxu0 0.0
    %1740 = vmatpush1.xpose.msra.mxu0 0.0
    %1741 = vmatprep.subr.mxu0 0.0
    %1742 = vmatpush1.xpose.msra.mxu0 0.0
    %1743 = vmatprep.subr.mxu0 0.0
    %1744 = vmatpush1.xpose.msra.mxu0 0.0
    %1745 = vmatprep.subr.mxu0 0.0
    %1746 = vmatpush1.xpose.msra.mxu0 0.0
    %1747 = vmatprep.subr.mxu0 0.0
    %1748 = vmatpush1.xpose.msra.mxu0 0.0
    %1749 = vmatprep.subr.mxu0 0.0
    %1750 = vmatpush1.xpose.msra.mxu0 0.0
    %1751 = vmatprep.subr.mxu0 0.0
    %1752 = vmatpush1.xpose.msra.mxu0 0.0
    %1753 = vmatprep.subr.mxu0 0.0
    %1754 = vmatpush1.xpose.msra.mxu0 0.0
    %1755 = vmatprep.subr.mxu0 0.0
    %1756 = vmatpush1.xpose.msra.mxu0 0.0
    %1757 = vmatprep.subr.mxu0 0.0
    %1758 = vmatpush1.xpose.msra.mxu0 0.0
    %1759 = vmatprep.subr.mxu0 0.0
    %1760 = vmatpush1.xpose.msra.mxu0 0.0
    %1761 = vmatprep.subr.mxu0 0.0
    %1762 = vmatpush1.xpose.msra.mxu0 0.0
    %1763 = vmatprep.subr.mxu0 0.0
    %1764 = vmatpush1.xpose.msra.mxu0 0.0
    %1765 = vmatprep.subr.mxu0 0.0
    %1766 = vmatpush1.xpose.msra.mxu0 0.0
    %1767 = vmatprep.subr.mxu0 0.0
    %1768 = vmatpush1.xpose.msra.mxu0 0.0
    %1769 = vmatprep.subr.mxu0 0.0
    %1770 = vmatpush1.xpose.msra.mxu0 0.0
    %1771 = vmatprep.subr.mxu0 0.0
    %1772 = vmatpush1.xpose.msra.mxu0 0.0
    %1773 = vmatprep.subr.mxu0 0.0
    %1774 = vmatpush1.xpose.msra.mxu0 0.0
    %1775 = vmatprep.subr.mxu0 0.0
    %1776 = vmatpush1.xpose.msra.mxu0 0.0
    %1777 = vmatprep.mubr.f32.mxu0 0.0
    %1778 = vmatmul.mubr.f32.gmra.mrb[0].mxu0 %v1705
    %v1779 = vpop.f32.mrb[0].mxu0
    %v1780 = vadd.f32 0.0, %v1779
    %v1781 = vpop.f32.mrb[0].mxu0
    %1782 = vmatprep.mubr.f32.mxu0 0.0
    %1783 = vmatmul.mubr.f32.gmra.mrb[0].mxu0 %v1707
    %v1784 = vpop.f32.mrb[0].mxu0
    %v1785 = vadd.f32 0.0, %v1784
    %v1786 = vpop.f32.mrb[0].mxu0
    %1787 = vdwg.mxu0
    %v1788 = vmul.f32 %v1780, 0.35355338
    %v1789 = vmul.f32 %v1785, 0.35355338
    %v1790 = vsel %vm346, %v1788, -inf
    %1791 = vmax.xlane.f32.xlu0 %v1790
    %v1792 = vpop.xlane.xlu0 %1791
    %v1793 = vsel %vm346, %v1789, -inf
    %1794 = vmax.xlane.f32.xlu0 %v1793
    %v1795 = vpop.xlane.xlu0 %1794
    %v1796 = vsub.f32 %v1788, %v1792
    %v1797 = vsub.f32 %v1789, %v1795
    %v1798 = vmul.f32 %v1796, 1.442695
    %v1799 = vpow.pop %v1798
    %v1800 = vmul.f32 %v1797, 1.442695
    %v1801 = vpow.pop %v1800
    %v1802 = vsel %vm346, %v1799, 0.0
    %1803 = vadd.xlane.f32.xlu0 %v1802
    %v1804 = vpop.xlane.xlu0 %1803
    %v1805 = vsel %vm346, %v1801, 0.0
    %1806 = vadd.xlane.f32.xlu0 %v1805
    %v1807 = vpop.xlane.xlu0 %1806
    %v1808 = vrcp.pop %v1804
    %v1809 = vrcp.pop %v1807
    %v1810 = vmul.f32 %v1799, %v1808
    %v1811 = vmul.f32 %v1801, %v1809
    %1812 = vrot.lane.b32.xlu0 %v246, 40
    %v1813 = vpop.permute.xlu0 %1812
    %1814 = vrot.lane.b32.xlu0 %v251, 40
    %v1815 = vpop.permute.xlu0 %1814
    %v1819 = vsel %vm346, %v1810, 0
    %v1822 = vsel %vm346, %v1811, 0
    %1824 = vmatprep.subr.mxu0 0.0
    %1825 = vmatpush1.msra.mxu0 %v1813
    %1826 = vmatprep.subr.mxu0 0.0
    %1827 = vmatpush1.msra.mxu0 %v1815
    %1828 = vmatprep.subr.mxu0 0.0
    %1829 = vmatpush1.msra.mxu0 0.0
    %1830 = vmatprep.subr.mxu0 0.0
    %1831 = vmatpush1.msra.mxu0 0.0
    %1832 = vmatprep.subr.mxu0 0.0
    %1833 = vmatpush1.msra.mxu0 0.0
    %1834 = vmatprep.subr.mxu0 0.0
    %1835 = vmatpush1.msra.mxu0 0.0
    %1836 = vmatprep.subr.mxu0 0.0
    %1837 = vmatpush1.msra.mxu0 0.0
    %1838 = vmatprep.subr.mxu0 0.0
    %1839 = vmatpush1.msra.mxu0 0.0
    %1840 = vmatprep.subr.mxu0 0.0
    %1841 = vmatpush1.msra.mxu0 0.0
    %1842 = vmatprep.subr.mxu0 0.0
    %1843 = vmatpush1.msra.mxu0 0.0
    %1844 = vmatprep.subr.mxu0 0.0
    %1845 = vmatpush1.msra.mxu0 0.0
    %1846 = vmatprep.subr.mxu0 0.0
    %1847 = vmatpush1.msra.mxu0 0.0
    %1848 = vmatprep.subr.mxu0 0.0
    %1849 = vmatpush1.msra.mxu0 0.0
    %1850 = vmatprep.subr.mxu0 0.0
    %1851 = vmatpush1.msra.mxu0 0.0
    %1852 = vmatprep.subr.mxu0 0.0
    %1853 = vmatpush1.msra.mxu0 0.0
    %1854 = vmatprep.subr.mxu0 0.0
    %1855 = vmatpush1.msra.mxu0 0.0
    %1856 = vmatprep.subr.mxu0 0.0
    %1857 = vmatpush1.msra.mxu0 0.0
    %1858 = vmatprep.subr.mxu0 0.0
    %1859 = vmatpush1.msra.mxu0 0.0
    %1860 = vmatprep.subr.mxu0 0.0
    %1861 = vmatpush1.msra.mxu0 0.0
    %1862 = vmatprep.subr.mxu0 0.0
    %1863 = vmatpush1.msra.mxu0 0.0
    %1864 = vmatprep.subr.mxu0 0.0
    %1865 = vmatpush1.msra.mxu0 0.0
    %1866 = vmatprep.subr.mxu0 0.0
    %1867 = vmatpush1.msra.mxu0 0.0
    %1868 = vmatprep.subr.mxu0 0.0
    %1869 = vmatpush1.msra.mxu0 0.0
    %1870 = vmatprep.subr.mxu0 0.0
    %1871 = vmatpush1.msra.mxu0 0.0
    %1872 = vmatprep.subr.mxu0 0.0
    %1873 = vmatpush1.msra.mxu0 0.0
    %1874 = vmatprep.subr.mxu0 0.0
    %1875 = vmatpush1.msra.mxu0 0.0
    %1876 = vmatprep.subr.mxu0 0.0
    %1877 = vmatpush1.msra.mxu0 0.0
    %1878 = vmatprep.subr.mxu0 0.0
    %1879 = vmatpush1.msra.mxu0 0.0
    %1880 = vmatprep.subr.mxu0 0.0
    %1881 = vmatpush1.msra.mxu0 0.0
    %1882 = vmatprep.subr.mxu0 0.0
    %1883 = vmatpush1.msra.mxu0 0.0
    %1884 = vmatprep.subr.mxu0 0.0
    %1885 = vmatpush1.msra.mxu0 0.0
    %1886 = vmatprep.subr.mxu0 0.0
    %1887 = vmatpush1.msra.mxu0 0.0
    %1888 = vmatprep.mubr.f32.mxu0 0.0
    %1889 = vmatmul.mubr.f32.gmra.mrb[0].mxu0 %v1819
    %v1890 = vpop.f32.mrb[0].mxu0
    %v1891 = vadd.f32 0.0, %v1890
    %v1892 = vpop.f32.mrb[0].mxu0
    %1893 = vmatprep.mubr.f32.mxu0 0.0
    %1894 = vmatmul.mubr.f32.gmra.mrb[0].mxu0 %v1822
    %v1895 = vpop.f32.mrb[0].mxu0
    %v1896 = vadd.f32 0.0, %v1895
    %v1897 = vpop.f32.mrb[0].mxu0
    %1898 = vdwg.mxu0
    %1901 = vrot.lane.b32.xlu0 %v1487, 8
    %v1902 = vpop.permute.xlu0 %1901
    %1903 = vrot.lane.b32.xlu0 %v1492, 8
    %v1904 = vpop.permute.xlu0 %1903
    %1909 = vrot.lane.b32.xlu0 %v1689, 16
    %v1910 = vpop.permute.xlu0 %1909
    %1911 = vrot.lane.b32.xlu0 %v1694, 16
    %v1912 = vpop.permute.xlu0 %1911
    %1917 = vrot.lane.b32.xlu0 %v1891, 24
    %v1918 = vpop.permute.xlu0 %1917
    %1919 = vrot.lane.b32.xlu0 %v1896, 24
    %v1920 = vpop.permute.xlu0 %1919
    %v1923 = vsel %vm260, %v1285, %v1902
    %v1924 = vsel %vm260, %v1290, %v1904
    %v1925 = vsel %vm346, %v1923, %v1910
    %v1926 = vsel %vm346, %v1924, %v1912
    %v1927 = vsel %vm1090, %v1925, %v1918
    %v1928 = vsel %vm1090, %v1926, %v1920
    %v1929 = vld [vmem:[%s5] sm:$0x1]
    %v1931 = vlaneseq
    %v1932 = vshrl.u32 %v1931, 7
    %v1933 = vsub.s32 0, %v1932
    %v1934 = vrot.slane %v1929, %v1933
    %v1936 = vadd.f32 %v65, %v1934
    %v1937 = vadd.f32 %v66, %v1934
    %v1938 = vadd.f32 %v67, %v1934
    %v1939 = vadd.f32 %v68, %v1934
    %v1940 = vld [vmem:[#allocation7] sm:$0xff]
    %v1941 = vld [vmem:[#allocation7 + $0x8] sm:$0xff]
    %v1942 = vld [vmem:[#allocation7 + $0x10] sm:$0xff]
    %v1943 = vld [vmem:[#allocation7 + $0x18] sm:$0xff]
    %v1945 = vsel %vm69, %v1091, 0
    %v1948 = vsel %vm69, %v1092, 0
    %v1951 = vsel %vm69, %v1927, 0
    %v1954 = vsel %vm69, %v1928, 0
    %1956 = vmatprep.subr.mxu0 0.0
    %1957 = vmatpush1.msra.mxu0 %v1940
    %1958 = vmatprep.subr.mxu0 0.0
    %1959 = vmatpush1.msra.mxu0 %v1941
    %1960 = vmatprep.subr.mxu0 0.0
    %1961 = vmatpush1.msra.mxu0 %v1942
    %1962 = vmatprep.subr.mxu0 0.0
    %1963 = vmatpush1.msra.mxu0 %v1943
    %1964 = vmatprep.subr.mxu0 0.0
    %1965 = vmatpush1.msra.mxu0 0.0
    %1966 = vmatprep.subr.mxu0 0.0
    %1967 = vmatpush1.msra.mxu0 0.0
    %1968 = vmatprep.subr.mxu0 0.0
    %1969 = vmatpush1.msra.mxu0 0.0
    %1970 = vmatprep.subr.mxu0 0.0
    %1971 = vmatpush1.msra.mxu0 0.0
    %1972 = vmatprep.subr.mxu0 0.0
    %1973 = vmatpush1.msra.mxu0 0.0
    %1974 = vmatprep.subr.mxu0 0.0
    %1975 = vmatpush1.msra.mxu0 0.0
    %1976 = vmatprep.subr.mxu0 0.0
    %1977 = vmatpush1.msra.mxu0 0.0
    %1978 = vmatprep.subr.mxu0 0.0
    %1979 = vmatpush1.msra.mxu0 0.0
    %1980 = vmatprep.subr.mxu0 0.0
    %1981 = vmatpush1.msra.mxu0 0.0
    %1982 = vmatprep.subr.mxu0 0.0
    %1983 = vmatpush1.msra.mxu0 0.0
    %1984 = vmatprep.subr.mxu0 0.0
    %1985 = vmatpush1.msra.mxu0 0.0
    %1986 = vmatprep.subr.mxu0 0.0
    %1987 = vmatpush1.msra.mxu0 0.0
    %1988 = vmatprep.subr.mxu0 0.0
    %1989 = vmatpush1.msra.mxu0 0.0
    %1990 = vmatprep.subr.mxu0 0.0
    %1991 = vmatpush1.msra.mxu0 0.0
    %1992 = vmatprep.subr.mxu0 0.0
    %1993 = vmatpush1.msra.mxu0 0.0
    %1994 = vmatprep.subr.mxu0 0.0
    %1995 = vmatpush1.msra.mxu0 0.0
    %1996 = vmatprep.subr.mxu0 0.0
    %1997 = vmatpush1.msra.mxu0 0.0
    %1998 = vmatprep.subr.mxu0 0.0
    %1999 = vmatpush1.msra.mxu0 0.0
    %2000 = vmatprep.subr.mxu0 0.0
    %2001 = vmatpush1.msra.mxu0 0.0
    %2002 = vmatprep.subr.mxu0 0.0
    %2003 = vmatpush1.msra.mxu0 0.0
    %2004 = vmatprep.subr.mxu0 0.0
    %2005 = vmatpush1.msra.mxu0 0.0
    %2006 = vmatprep.subr.mxu0 0.0
    %2007 = vmatpush1.msra.mxu0 0.0
    %2008 = vmatprep.subr.mxu0 0.0
    %2009 = vmatpush1.msra.mxu0 0.0
    %2010 = vmatprep.subr.mxu0 0.0
    %2011 = vmatpush1.msra.mxu0 0.0
    %2012 = vmatprep.subr.mxu0 0.0
    %2013 = vmatpush1.msra.mxu0 0.0
    %2014 = vmatprep.subr.mxu0 0.0
    %2015 = vmatpush1.msra.mxu0 0.0
    %2016 = vmatprep.subr.mxu0 0.0
    %2017 = vmatpush1.msra.mxu0 0.0
    %2018 = vmatprep.subr.mxu0 0.0
    %2019 = vmatpush1.msra.mxu0 0.0
    %2020 = vmatprep.mubr.f32.mxu0 0.0
    %2021 = vmatmul.mubr.f32.gmra.mrb[0].mxu0 %v1945
    %v2022 = vpop.f32.mrb[0].mxu0
    %v2023 = vadd.f32 0.0, %v2022
    %v2024 = vpop.f32.mrb[0].mxu0
    %2025 = vmatprep.mubr.f32.mxu0 0.0
    %2026 = vmatmul.mubr.f32.gmra.mrb[0].mxu0 %v1948
    %v2027 = vpop.f32.mrb[0].mxu0
    %v2028 = vadd.f32 0.0, %v2027
    %v2029 = vpop.f32.mrb[0].mxu0
    %2030 = vmatprep.mubr.f32.mxu0 0.0
    %2031 = vmatmul.mubr.f32.gmra.mrb[0].mxu0 %v1951
    %v2032 = vpop.f32.mrb[0].mxu0
    %v2033 = vadd.f32 0.0, %v2032
    %v2034 = vpop.f32.mrb[0].mxu0
    %2035 = vmatprep.mubr.f32.mxu0 0.0
    %2036 = vmatmul.mubr.f32.gmra.mrb[0].mxu0 %v1954
    %v2037 = vpop.f32.mrb[0].mxu0
    %v2038 = vadd.f32 0.0, %v2037
    %v2039 = vpop.f32.mrb[0].mxu0
    %2040 = vdwg.mxu0
    %v2041 = vadd.f32 %v1936, %v2023
    %v2042 = vadd.f32 %v1937, %v2028
    %v2043 = vadd.f32 %v1938, %v2033
    %v2044 = vadd.f32 %v1939, %v2038
    %2045 = vst.msk [vmem:[#allocation8] sm:$0xff] %vm69, %v2041
    %2046 = vst.msk [vmem:[#allocation8 + $0x8] sm:$0xff] %vm69, %v2042
    %2047 = vst.msk [vmem:[#allocation8 + $0x10] sm:$0xff] %vm69, %v2043
    %2048 = vst.msk [vmem:[#allocation8 + $0x18] sm:$0xff] %vm69, %v2044
    // Predicated region
    $region38: #{attention_forward.1} parent=1 // pred_check
      _
    $region39: #{attention_forward.1} parent=1 // pred_check_branch
      %2050 = sbr.rel (0) target = $region41
    $region40: #{attention_forward.1} parent=1 // pred_region
      %s2052 = ssub.s32 512, 512
      %2053 = vsyncadd [#allocation4], %s2052
      %s2054 = sshll.u32 [#allocation8], 4
      %s2055 = int_to_ptr.vmem [resolvable:$true] %s2054
      %2060 = dma.vmem_to_hbm [thread:$0]  %s2055, 512, %s6, [#allocation4], 128, 128, 8
    $region41: #{attention_forward.1} parent=1 // pred_fallthru
      _
    // Predicated region
    $region42: #{attention_forward.1} parent=1 // pred_check
      _
    $region43: #{attention_forward.1} parent=1 // pred_check_branch
      %2062 = sbr.rel (0) target = $region45
    $region44: #{attention_forward.1} parent=1 // pred_region
      %2063 = dma.done [#allocation4], 512
    $region45: #{attention_forward.1} parent=1 // pred_fallthru
      _
    %2064 = vsyncpa [#allocation3], 1
    %2065 = vsyncpa [#allocation6], 1
    %2066 = vsyncpa [#allocation4], 1

</llo_original>
